<compile_context>
chip_gen: v7x
topology: tpu7x:2x2x1
jax: 0.10.0
libtpu: 0.0.40
codegen_flags: <defaults>
</compile_context>

<pallas_src>
import jax
import jax.numpy as jnp
from jax.experimental import pallas as pl
from jax.experimental.pallas import tpu as pltpu


def se_gate_mul_kernel(s_ref, w_ref, b_ref, x_ref, o_ref):
    # 1x1 conv on a 1x1 spatial input == per-output-channel dot(weight_row, squeeze).
    # (Cblk, Cin) * (1, Cin) --sum over lanes--> (Cblk, 1)
    g = jnp.sum(w_ref[...] * s_ref[...], axis=1, keepdims=True)
    g = jax.nn.sigmoid(g + b_ref[...])          # (Cblk, 1) gate
    # broadcast the per-channel gate over the spatial (lane) axis
    o_ref[...] = x_ref[...] * g


def se_scale(x_nchw, squeeze_nc11, weight_oihw, bias_o, *, c_blk=528):
    n, c_out, h, w = x_nchw.shape
    c_in = squeeze_nc11.shape[1]
    assert n == 1, "kernel written for batch=1 (matches the reference module)"
    hw = h * w

    # All of these are free views / tiny tensors — no feature-map transposes.
    x = x_nchw.reshape(c_out, hw).astype(jnp.float32)           # (Cout, HW)
    s = squeeze_nc11.reshape(1, c_in).astype(jnp.float32)       # (1, Cin)
    wt = weight_oihw.reshape(c_out, c_in).astype(jnp.float32)   # (Cout, Cin)
    b = bias_o.reshape(c_out, 1).astype(jnp.float32)            # (Cout, 1)

    # Channel tile: multiple of 8 that divides C_out (1056 = 2 * 528).
    if c_out % c_blk != 0 or c_blk % 8 != 0:
        c_blk = c_out                                           # fallback: single tile
    grid = (c_out // c_blk,)

    # Advisory scheduling hint: tiny, HBM-bound op.
    bytes_accessed = 2 * c_out * hw * 4 + c_out * c_in * 4 + c_out * 4 + c_in * 4
    cost = pl.CostEstimate(
        flops=2 * c_out * c_in + c_out + c_out * hw,
        transcendentals=c_out,
        bytes_accessed=bytes_accessed,
    )

    out = pl.pallas_call(
        se_gate_mul_kernel,
        out_shape=jax.ShapeDtypeStruct((c_out, hw), jnp.float32),
        grid=grid,
        in_specs=[
            pl.BlockSpec((1, c_in), lambda i: (0, 0)),          # squeeze (shared)
            pl.BlockSpec((c_blk, c_in), lambda i: (i, 0)),      # weight rows for this tile
            pl.BlockSpec((c_blk, 1), lambda i: (i, 0)),         # bias slice
            pl.BlockSpec((c_blk, hw), lambda i: (i, 0)),        # feature-map slice
        ],
        out_specs=pl.BlockSpec((c_blk, hw), lambda i: (i, 0)),
        input_output_aliases={3: 0},                            # reuse x's HBM buffer
        cost_estimate=cost,
        compiler_params=pltpu.CompilerParams(
            dimension_semantics=("parallel",)),
    )(s, wt, b, x)

    return out.reshape(1, c_out, h, w)


if __name__ == "__main__":
    key = jax.random.PRNGKey(0)
    k1, k2, k3, k4 = jax.random.split(key, 4)

    C_IN, C_OUT, H, W = 44, 1056, 14, 14
    x326 = jax.random.normal(k1, (1, C_OUT, H, W), dtype=jnp.float32)
    x329 = jax.random.normal(k2, (1, C_IN, 1, 1), dtype=jnp.float32)

    # deterministic synthetic conv parameters (Conv2d(44, 1056, kernel=1))
    weight = jax.random.normal(k3, (C_OUT, C_IN, 1, 1), dtype=jnp.float32) * 0.05
    bias = jax.random.normal(k4, (C_OUT,), dtype=jnp.float32) * 0.05

    out = se_scale(x326, x329, weight, bias)
    jax.block_until_ready(out)

    # pure-JAX reference check
    ref_gate = jax.nn.sigmoid(
        jnp.einsum("oi,i->o", weight.reshape(C_OUT, C_IN), x329.reshape(C_IN)) + bias
    )
    ref = x326 * ref_gate.reshape(1, C_OUT, 1, 1)
    assert out.shape == (1, C_OUT, H, W)
    assert jnp.allclose(out, ref, atol=1e-5, rtol=1e-5)

    print("KERNEL_OK")
</pallas_src>

<mosaic_0001>
module attributes {stable_mosaic.version = 11 : i64} {
  func.func @se_gate_mul_kernel(%arg0: i32, %arg1: memref<1x44xf32, #tpu.memory_space<vmem>>, %arg2: memref<528x44xf32, #tpu.memory_space<vmem>>, %arg3: memref<528x1xf32, #tpu.memory_space<vmem>>, %arg4: memref<528x196xf32, #tpu.memory_space<vmem>>, %arg5: memref<528x196xf32, #tpu.memory_space<vmem>>) attributes {dimension_semantics = [#tpu.dimension_semantics<parallel>], iteration_bounds = array<i64: 2>, scalar_prefetch = 0 : i64, scratch_operands = 0 : i64, tpu.core_type = #tpu.core_type<tc>, window_params = [{pipeline_mode = #tpu.pipeline_mode<synchronous>, transform_indices = @transform_0, window_bounds = array<i64: 1, 44>}, {transform_indices = @transform_1, window_bounds = array<i64: 528, 44>}, {transform_indices = @transform_2, window_bounds = array<i64: 528, 1>}, {transform_indices = @transform_3, window_bounds = array<i64: 528, 196>}, {transform_indices = @transform_4, window_bounds = array<i64: 528, 196>}]} {
    %c0 = arith.constant 0 : index
    %c0_0 = arith.constant 0 : index
    %0 = vector.load %arg2[%c0, %c0_0] : memref<528x44xf32, #tpu.memory_space<vmem>>, vector<528x44xf32>
    %c0_1 = arith.constant 0 : index
    %c0_2 = arith.constant 0 : index
    %1 = vector.load %arg1[%c0_1, %c0_2] : memref<1x44xf32, #tpu.memory_space<vmem>>, vector<1x44xf32>
    %2 = vector.broadcast %1 : vector<1x44xf32> to vector<528x44xf32>
    %3 = arith.mulf %0, %2 : vector<528x44xf32>
    %cst = arith.constant dense<0.000000e+00> : vector<528xf32>
    %4 = vector.multi_reduction <add>, %3, %cst [1] : vector<528x44xf32> to vector<528xf32>
    %5 = vector.shape_cast %4 : vector<528xf32> to vector<528x1xf32>
    %c0_3 = arith.constant 0 : index
    %c0_4 = arith.constant 0 : index
    %6 = vector.load %arg3[%c0_3, %c0_4] : memref<528x1xf32, #tpu.memory_space<vmem>>, vector<528x1xf32>
    %7 = arith.addf %5, %6 : vector<528x1xf32>
    %8 = arith.negf %7 : vector<528x1xf32>
    %9 = math.exp %8 : vector<528x1xf32>
    %cst_5 = arith.constant 1.000000e+00 : f32
    %10 = vector.broadcast %cst_5 : f32 to vector<528x1xf32>
    %11 = arith.addf %10, %9 : vector<528x1xf32>
    %12 = arith.divf %10, %11 : vector<528x1xf32>
    %c0_6 = arith.constant 0 : index
    %c0_7 = arith.constant 0 : index
    %13 = vector.load %arg4[%c0_6, %c0_7] : memref<528x196xf32, #tpu.memory_space<vmem>>, vector<528x196xf32>
    %14 = vector.broadcast %12 : vector<528x1xf32> to vector<528x196xf32>
    %15 = arith.mulf %13, %14 : vector<528x196xf32>
    %c0_8 = arith.constant 0 : index
    %c0_9 = arith.constant 0 : index
    %16 = vector.load %arg5[%c0_8, %c0_9] : memref<528x196xf32, #tpu.memory_space<vmem>>, vector<528x196xf32>
    tpu.vector_store %arg5[%c0_8, %c0_9], %15 {strides = array<i32>} : memref<528x196xf32, #tpu.memory_space<vmem>>, vector<528x196xf32>,
    return
  }
  func.func @transform_0(%arg0: i32) -> (i32, i32) {
    %c0_i32 = arith.constant 0 : i32
    %c0_i32_0 = arith.constant 0 : i32
    %c0_i32_1 = arith.constant 0 : i32
    return %c0_i32, %c0_i32_0 : i32, i32
  }
  func.func @transform_1(%arg0: i32) -> (i32, i32) {
    %c0_i32 = arith.constant 0 : i32
    %c0_i32_0 = arith.constant 0 : i32
    return %arg0, %c0_i32 : i32, i32
  }
  func.func @transform_2(%arg0: i32) -> (i32, i32) {
    %c0_i32 = arith.constant 0 : i32
    %c0_i32_0 = arith.constant 0 : i32
    return %arg0, %c0_i32 : i32, i32
  }
  func.func @transform_3(%arg0: i32) -> (i32, i32) {
    %c0_i32 = arith.constant 0 : i32
    %c0_i32_0 = arith.constant 0 : i32
    return %arg0, %c0_i32 : i32, i32
  }
  func.func @transform_4(%arg0: i32) -> (i32, i32) {
    %c0_i32 = arith.constant 0 : i32
    %c0_i32_0 = arith.constant 0 : i32
    return %arg0, %c0_i32 : i32, i32
  }
}

</mosaic_0001>

<llo_original>
// kernel: tpu_custom_call.1
$region0: #{tpu_custom_call.1}
  #allocation0 [shape = 'u32[]', space=smem, size = 0x4, offset = 0x4, fixed_abs, tag = 'smem constant byte address 0x4 - core index']
  #allocation1 [shape = 'u32[144,128]{1,0:T(1,128)}', space=vmem, size = 0x12000, scoped, tag = 'internal scratch']
  %s0 = inlined_call_operand.vmem [shape: f32[1,44], index: 0, kind: input, shape index: {}]
  %s1 = inlined_call_operand.vmem [shape: f32[1056,44], index: 1, kind: input, shape index: {}]
  %s2 = inlined_call_operand.vmem [shape: f32[1056,1], index: 2, kind: input, shape index: {}]
  %s3 = inlined_call_operand.vmem [shape: f32[1056,196], index: 3, kind: input, shape index: {}, may-alias: {3,4}]
  %s4 = inlined_call_operand.vmem [shape: f32[1056,196], index: 4, kind: output, shape index: {}, may-alias: {3,4}]
  %s5 = sld [smem:[#allocation0]]
  $region49: #{tpu_custom_call.1} parent=0
    _
  %s7 = ssub.s32 1, %s5
  %s8 = scalar_select 0, %s7, %s5
  loop: start=0, step=1, limit=4
  $region2: #{tpu_custom_call.1} parent=0 // loop_pre_header
    _
  $region3: #{tpu_custom_call.1} parent=0 // loop_header
    %s10 = sphi 0, %s14
    %p11 = scmp.ge.s32.totalorder %s10, 4
    %s18 = sphi 0, %s18
    %s20 = sphi 0, %s18
    %s21 = sphi 0, %s20
    %s35 = sphi 0, %s21
    %s41 = sphi 0, %s43
    %s44 = sphi 0, %s41
    %s45 = sphi 0, %s44
    %s61 = sphi 0, %s45
    %s67 = sphi 0, %s69
    %s70 = sphi 0, %s67
    %s71 = sphi 0, %s70
    %s87 = sphi 0, %s71
    %s93 = sphi 0, %s95
    %s96 = sphi 0, %s93
    %s97 = sphi 0, %s96
    %s113 = sphi 0, %s97
    %s119 = sphi 0, %s121
    %s122 = sphi 0, %s119
    %s123 = sphi 0, %s122
    %s139 = sphi 0, %s123
  $region4: #{tpu_custom_call.1} parent=0 // loop_header_branch
    %13 = sbr.rel (%p11) target = $region8
  $region5: #{tpu_custom_call.1} parent=0 // loop_body
    %s15 = ssub.s32 %s10, 1
    %s16 = ssub.s32 %s10, 2
    %s17 = sadd.s32 %s10, 1
    %s19 = sadd.s32 %s18, 1
    %p22 = scmp.eq.s32.totalorder %s10, 1
    %p23 = scmp.ne.s32.totalorder %s18, %s20
    %p24 = scmp.eq.s32.totalorder %s10, 0
    %p25 = por %p23, %p24
    %p26 = scmp.ne.s32.totalorder %s18, %s20
    %p27 = scmp.eq.s32.totalorder %s15, 1
    %p28 = por %p26, %p27
    %p29 = scmp.ne.s32.totalorder %s20, %s21
    %p30 = scmp.eq.s32.totalorder %s15, 0
    %p31 = por %p29, %p30
    %p32 = scmp.ne.s32.totalorder %s20, %s21
    %p33 = scmp.eq.s32.totalorder %s16, 1
    %p34 = por %p32, %p33
    %p36 = scmp.ne.s32.totalorder %s21, %s35
    %p37 = scmp.eq.s32.totalorder %s16, 0
    %p38 = por %p36, %p37
    %s39 = ssub.s32 %s10, %s17
    %p40 = scmp.eq.s32.totalorder %s39, 0
    %s42 = sadd.s32 %s41, 1
    %s43 = scalar_select %p40, %s41, %s42
    %p46 = pneg %p40
    %p47 = scmp.eq.s32.totalorder %s10, 1
    %p48 = por %p46, %p47
    %p49 = scmp.ne.s32.totalorder %s41, %s44
    %p50 = scmp.eq.s32.totalorder %s10, 0
    %p51 = por %p49, %p50
    %p52 = scmp.ne.s32.totalorder %s41, %s44
    %p53 = scmp.eq.s32.totalorder %s15, 1
    %p54 = por %p52, %p53
    %p55 = scmp.ne.s32.totalorder %s44, %s45
    %p56 = scmp.eq.s32.totalorder %s15, 0
    %p57 = por %p55, %p56
    %p58 = scmp.ne.s32.totalorder %s44, %s45
    %p59 = scmp.eq.s32.totalorder %s16, 1
    %p60 = por %p58, %p59
    %p62 = scmp.ne.s32.totalorder %s45, %s61
    %p63 = scmp.eq.s32.totalorder %s16, 0
    %p64 = por %p62, %p63
    %s65 = ssub.s32 %s10, %s17
    %p66 = scmp.eq.s32.totalorder %s65, 0
    %s68 = sadd.s32 %s67, 1
    %s69 = scalar_select %p66, %s67, %s68
    %p72 = pneg %p66
    %p73 = scmp.eq.s32.totalorder %s10, 1
    %p74 = por %p72, %p73
    %p75 = scmp.ne.s32.totalorder %s67, %s70
    %p76 = scmp.eq.s32.totalorder %s10, 0
    %p77 = por %p75, %p76
    %p78 = scmp.ne.s32.totalorder %s67, %s70
    %p79 = scmp.eq.s32.totalorder %s15, 1
    %p80 = por %p78, %p79
    %p81 = scmp.ne.s32.totalorder %s70, %s71
    %p82 = scmp.eq.s32.totalorder %s15, 0
    %p83 = por %p81, %p82
    %p84 = scmp.ne.s32.totalorder %s70, %s71
    %p85 = scmp.eq.s32.totalorder %s16, 1
    %p86 = por %p84, %p85
    %p88 = scmp.ne.s32.totalorder %s71, %s87
    %p89 = scmp.eq.s32.totalorder %s16, 0
    %p90 = por %p88, %p89
    %s91 = ssub.s32 %s10, %s17
    %p92 = scmp.eq.s32.totalorder %s91, 0
    %s94 = sadd.s32 %s93, 1
    %s95 = scalar_select %p92, %s93, %s94
    %p98 = pneg %p92
    %p99 = scmp.eq.s32.totalorder %s10, 1
    %p100 = por %p98, %p99
    %p101 = scmp.ne.s32.totalorder %s93, %s96
    %p102 = scmp.eq.s32.totalorder %s10, 0
    %p103 = por %p101, %p102
    %p104 = scmp.ne.s32.totalorder %s93, %s96
    %p105 = scmp.eq.s32.totalorder %s15, 1
    %p106 = por %p104, %p105
    %p107 = scmp.ne.s32.totalorder %s96, %s97
    %p108 = scmp.eq.s32.totalorder %s15, 0
    %p109 = por %p107, %p108
    %p110 = scmp.ne.s32.totalorder %s96, %s97
    %p111 = scmp.eq.s32.totalorder %s16, 1
    %p112 = por %p110, %p111
    %p114 = scmp.ne.s32.totalorder %s97, %s113
    %p115 = scmp.eq.s32.totalorder %s16, 0
    %p116 = por %p114, %p115
    %s117 = ssub.s32 %s10, %s17
    %p118 = scmp.eq.s32.totalorder %s117, 0
    %s120 = sadd.s32 %s119, 1
    %s121 = scalar_select %p118, %s119, %s120
    %p124 = pneg %p118
    %p125 = scmp.eq.s32.totalorder %s10, 1
    %p126 = por %p124, %p125
    %p127 = scmp.ne.s32.totalorder %s119, %s122
    %p128 = scmp.eq.s32.totalorder %s10, 0
    %p129 = por %p127, %p128
    %p130 = scmp.ne.s32.totalorder %s119, %s122
    %p131 = scmp.eq.s32.totalorder %s15, 1
    %p132 = por %p130, %p131
    %p133 = scmp.ne.s32.totalorder %s122, %s123
    %p134 = scmp.eq.s32.totalorder %s15, 0
    %p135 = por %p133, %p134
    %p136 = scmp.ne.s32.totalorder %s122, %s123
    %p137 = scmp.eq.s32.totalorder %s16, 1
    %p138 = por %p136, %p137
    %p140 = scmp.ne.s32.totalorder %s123, %s139
    %p141 = scmp.eq.s32.totalorder %s16, 0
    %p142 = por %p140, %p141
    %p143 = scmp.le.s32.totalorder 1, %s10
    %p144 = scmp.lt.s32.totalorder %s10, 3
    %p145 = pnand %p143, %p144
    %p146 = pneg %p145
    // Predicated region
    $region9: #{tpu_custom_call.1} parent=5 // pred_check
      _
    $region10: #{tpu_custom_call.1} parent=5 // pred_check_branch
      %148 = sbr.rel (%p145) target = $region12
    $region11: #{tpu_custom_call.1} parent=5 // pred_region
      %s149 = ssub.s32 %s10, 1
      // Predicated region
      $region13: #{tpu_custom_call.1} parent=11 // pred_check
        %p150 = pneg %p31
      $region14: #{tpu_custom_call.1} parent=11 // pred_check_branch
        %152 = sbr.rel (%p150) target = $region16
      $region15: #{tpu_custom_call.1} parent=11 // pred_region
        _
      $region16: #{tpu_custom_call.1} parent=11 // pred_fallthru
        _
    $region12: #{tpu_custom_call.1} parent=5 // pred_fallthru
      _
    %p153 = scmp.lt.s32.totalorder %s10, 2
    // Predicated region
    $region17: #{tpu_custom_call.1} parent=5 // pred_check
      %p154 = pneg %p153
    $region18: #{tpu_custom_call.1} parent=5 // pred_check_branch
      %156 = sbr.rel (%p154) target = $region20
    $region19: #{tpu_custom_call.1} parent=5 // pred_region
      // Predicated region
      $region21: #{tpu_custom_call.1} parent=19 // pred_check
        %p157 = pneg %p51
      $region22: #{tpu_custom_call.1} parent=19 // pred_check_branch
        %159 = sbr.rel (%p157) target = $region24
      $region23: #{tpu_custom_call.1} parent=19 // pred_region
        %s160 = smul.u32 66, %s10
        %p161 = scmp.lt.s32.totalorder %s160, 131
        %s162 = scalar_select %p161, %s160, 131
        %s163 = smul.addr %s162, 8
        %s164 = scalar_lea.vmem %s1, %s163
        %s165 = smul.u32 66, %s10
      $region24: #{tpu_custom_call.1} parent=19 // pred_fallthru
        _
      // Predicated region
      $region25: #{tpu_custom_call.1} parent=19 // pred_check
        %p166 = pneg %p77
      $region26: #{tpu_custom_call.1} parent=19 // pred_check_branch
        %168 = sbr.rel (%p166) target = $region28
      $region27: #{tpu_custom_call.1} parent=19 // pred_region
        %s169 = smul.u32 66, %s10
        %p170 = scmp.lt.s32.totalorder %s169, 131
        %s171 = scalar_select %p170, %s169, 131
        %s172 = smul.addr %s171, 8
        %s173 = scalar_lea.vmem %s2, %s172
        %s174 = smul.u32 66, %s10
      $region28: #{tpu_custom_call.1} parent=19 // pred_fallthru
        _
      // Predicated region
      $region29: #{tpu_custom_call.1} parent=19 // pred_check
        %p175 = pneg %p103
      $region30: #{tpu_custom_call.1} parent=19 // pred_check_branch
        %177 = sbr.rel (%p175) target = $region32
      $region31: #{tpu_custom_call.1} parent=19 // pred_region
        %s178 = smul.u32 66, %s10
        %p179 = scmp.lt.s32.totalorder %s178, 131
        %s180 = scalar_select %p179, %s178, 131
        %s181 = smul.addr %s180, 2
        %s182 = smul.addr %s181, 8
        %s183 = scalar_lea.vmem %s3, %s182
        %s184 = smul.u32 66, %s10
      $region32: #{tpu_custom_call.1} parent=19 // pred_fallthru
        _
    $region20: #{tpu_custom_call.1} parent=5 // pred_fallthru
      _
    %p185 = scmp.le.s32.totalorder 1, %s10
    %p186 = scmp.lt.s32.totalorder %s10, 3
    %p187 = pnand %p185, %p186
    %p188 = pneg %p187
    // Predicated region
    $region33: #{tpu_custom_call.1} parent=5 // pred_check
      _
    $region34: #{tpu_custom_call.1} parent=5 // pred_check_branch
      %190 = sbr.rel (%p187) target = $region36
    $region35: #{tpu_custom_call.1} parent=5 // pred_region
      %s191 = ssub.s32 %s10, 1
      %p192 = pneg %p31
      %p193 = pneg %p28
      %s194 = smul.u32 66, %s15
      %p195 = scmp.lt.s32.totalorder %s194, 131
      %s196 = scalar_select %p195, %s194, 131
      %s197 = smul.addr %s196, 8
      %s198 = scalar_lea.vmem %s1, %s197
      %p199 = pneg %p57
      %p200 = pneg %p54
      %s201 = smul.u32 66, %s15
      %p202 = scmp.lt.s32.totalorder %s201, 131
      %s203 = scalar_select %p202, %s201, 131
      %s204 = smul.addr %s203, 8
      %s205 = scalar_lea.vmem %s2, %s204
      %p206 = pneg %p83
      %p207 = pneg %p80
      %s208 = smul.u32 66, %s15
      %p209 = scmp.lt.s32.totalorder %s208, 131
      %s210 = scalar_select %p209, %s208, 131
      %s211 = smul.addr %s210, 2
      %s212 = smul.addr %s211, 8
      %s213 = scalar_lea.vmem %s3, %s212
      %p214 = pneg %p109
      %p215 = pneg %p106
      %p216 = pneg %p135
      %p217 = pneg %p132
      %s218 = smul.u32 66, %s15
      %p219 = scmp.lt.s32.totalorder %s218, 131
      %s220 = scalar_select %p219, %s218, 131
      %s221 = smul.addr %s220, 2
      %s222 = smul.addr %s221, 8
      %s223 = scalar_lea.vmem %s4, %s222
      %s224 = smul.u32 66, %s15
      %p225 = scmp.lt.s32.totalorder %s224, 131
      %s226 = scalar_select %p225, %s224, 131
      %s227 = smul.addr %s226, 8
      %s228 = scalar_lea.vmem %s1, %s227
      %s229 = smul.u32 66, %s15
      %s230 = smul.u32 66, %s15
      %p231 = scmp.lt.s32.totalorder %s230, 131
      %s232 = scalar_select %p231, %s230, 131
      %s233 = smul.addr %s232, 8
      %s234 = scalar_lea.vmem %s2, %s233
      %s235 = smul.u32 66, %s15
      %s236 = smul.u32 66, %s15
      %p237 = scmp.lt.s32.totalorder %s236, 131
      %s238 = scalar_select %p237, %s236, 131
      %s239 = smul.addr %s238, 2
      %s240 = smul.addr %s239, 8
      %s241 = scalar_lea.vmem %s3, %s240
      %s242 = smul.u32 66, %s15
      %s243 = smul.u32 66, %s15
      %p244 = scmp.lt.s32.totalorder %s243, 131
      %s245 = scalar_select %p244, %s243, 131
      %s246 = smul.addr %s245, 2
      %s247 = smul.addr %s246, 8
      %s248 = scalar_lea.vmem %s4, %s247
      %s249 = smul.u32 66, %s15
      %v250 = vld [vmem:[%s228] sm:$0xff]
      %v251 = vld [vmem:[%s228 + $0x8] sm:$0xff]
      %v252 = vld [vmem:[%s228 + $0x10] sm:$0xff]
      %v253 = vld [vmem:[%s228 + $0x18] sm:$0xff]
      %v254 = vld [vmem:[%s228 + $0x20] sm:$0xff]
      %v255 = vld [vmem:[%s228 + $0x28] sm:$0xff]
      %v256 = vld [vmem:[%s228 + $0x30] sm:$0xff]
      %v257 = vld [vmem:[%s228 + $0x38] sm:$0xff]
      %v258 = vld [vmem:[%s228 + $0x40] sm:$0xff]
      %v259 = vld [vmem:[%s228 + $0x48] sm:$0xff]
      %v260 = vld [vmem:[%s228 + $0x50] sm:$0xff]
      %v261 = vld [vmem:[%s228 + $0x58] sm:$0xff]
      %v262 = vld [vmem:[%s228 + $0x60] sm:$0xff]
      %v263 = vld [vmem:[%s228 + $0x68] sm:$0xff]
      %v264 = vld [vmem:[%s228 + $0x70] sm:$0xff]
      %v265 = vld [vmem:[%s228 + $0x78] sm:$0xff]
      %v266 = vld [vmem:[%s228 + $0x80] sm:$0xff]
      %v267 = vld [vmem:[%s228 + $0x88] sm:$0xff]
      %v268 = vld [vmem:[%s228 + $0x90] sm:$0xff]
      %v269 = vld [vmem:[%s228 + $0x98] sm:$0xff]
      %v270 = vld [vmem:[%s228 + $0xa0] sm:$0xff]
      %v271 = vld [vmem:[%s228 + $0xa8] sm:$0xff]
      %v272 = vld [vmem:[%s228 + $0xb0] sm:$0xff]
      %v273 = vld [vmem:[%s228 + $0xb8] sm:$0xff]
      %v274 = vld [vmem:[%s228 + $0xc0] sm:$0xff]
      %v275 = vld [vmem:[%s228 + $0xc8] sm:$0xff]
      %v276 = vld [vmem:[%s228 + $0xd0] sm:$0xff]
      %v277 = vld [vmem:[%s228 + $0xd8] sm:$0xff]
      %v278 = vld [vmem:[%s228 + $0xe0] sm:$0xff]
      %v279 = vld [vmem:[%s228 + $0xe8] sm:$0xff]
      %v280 = vld [vmem:[%s228 + $0xf0] sm:$0xff]
      %v281 = vld [vmem:[%s228 + $0xf8] sm:$0xff]
      %v282 = vld [vmem:[%s228 + $0x100] sm:$0xff]
      %v283 = vld [vmem:[%s228 + $0x108] sm:$0xff]
      %v284 = vld [vmem:[%s228 + $0x110] sm:$0xff]
      %v285 = vld [vmem:[%s228 + $0x118] sm:$0xff]
      %v286 = vld [vmem:[%s228 + $0x120] sm:$0xff]
      %v287 = vld [vmem:[%s228 + $0x128] sm:$0xff]
      %v288 = vld [vmem:[%s228 + $0x130] sm:$0xff]
      %v289 = vld [vmem:[%s228 + $0x138] sm:$0xff]
      %v290 = vld [vmem:[%s228 + $0x140] sm:$0xff]
      %v291 = vld [vmem:[%s228 + $0x148] sm:$0xff]
      %v292 = vld [vmem:[%s228 + $0x150] sm:$0xff]
      %v293 = vld [vmem:[%s228 + $0x158] sm:$0xff]
      %v294 = vld [vmem:[%s228 + $0x160] sm:$0xff]
      %v295 = vld [vmem:[%s228 + $0x168] sm:$0xff]
      %v296 = vld [vmem:[%s228 + $0x170] sm:$0xff]
      %v297 = vld [vmem:[%s228 + $0x178] sm:$0xff]
      %v298 = vld [vmem:[%s228 + $0x180] sm:$0xff]
      %v299 = vld [vmem:[%s228 + $0x188] sm:$0xff]
      %v300 = vld [vmem:[%s228 + $0x190] sm:$0xff]
      %v301 = vld [vmem:[%s228 + $0x198] sm:$0xff]
      %v302 = vld [vmem:[%s228 + $0x1a0] sm:$0xff]
      %v303 = vld [vmem:[%s228 + $0x1a8] sm:$0xff]
      %v304 = vld [vmem:[%s228 + $0x1b0] sm:$0xff]
      %v305 = vld [vmem:[%s228 + $0x1b8] sm:$0xff]
      %v306 = vld [vmem:[%s228 + $0x1c0] sm:$0xff]
      %v307 = vld [vmem:[%s228 + $0x1c8] sm:$0xff]
      %v308 = vld [vmem:[%s228 + $0x1d0] sm:$0xff]
      %v309 = vld [vmem:[%s228 + $0x1d8] sm:$0xff]
      %v310 = vld [vmem:[%s228 + $0x1e0] sm:$0xff]
      %v311 = vld [vmem:[%s228 + $0x1e8] sm:$0xff]
      %v312 = vld [vmem:[%s228 + $0x1f0] sm:$0xff]
      %v313 = vld [vmem:[%s228 + $0x1f8] sm:$0xff]
      %v314 = vld [vmem:[%s228 + $0x200] sm:$0xff]
      %v315 = vld [vmem:[%s228 + $0x208] sm:$0xff]
      %v316 = vld [vmem:[%s0] sm:$0x1]
      %v318 = vlaneseq
      %v319 = vshrl.u32 %v318, 7
      %v320 = vsub.s32 0, %v319
      %v321 = vrot.slane %v316, %v320
      %v323 = vmul.f32 %v250, %v321
      %v324 = vmul.f32 %v251, %v321
      %v325 = vmul.f32 %v252, %v321
      %v326 = vmul.f32 %v253, %v321
      %v327 = vmul.f32 %v254, %v321
      %v328 = vmul.f32 %v255, %v321
      %v329 = vmul.f32 %v256, %v321
      %v330 = vmul.f32 %v257, %v321
      %v331 = vmul.f32 %v258, %v321
      %v332 = vmul.f32 %v259, %v321
      %v333 = vmul.f32 %v260, %v321
      %v334 = vmul.f32 %v261, %v321
      %v335 = vmul.f32 %v262, %v321
      %v336 = vmul.f32 %v263, %v321
      %v337 = vmul.f32 %v264, %v321
      %v338 = vmul.f32 %v265, %v321
      %v339 = vmul.f32 %v266, %v321
      %v340 = vmul.f32 %v267, %v321
      %v341 = vmul.f32 %v268, %v321
      %v342 = vmul.f32 %v269, %v321
      %v343 = vmul.f32 %v270, %v321
      %v344 = vmul.f32 %v271, %v321
      %v345 = vmul.f32 %v272, %v321
      %v346 = vmul.f32 %v273, %v321
      %v347 = vmul.f32 %v274, %v321
      %v348 = vmul.f32 %v275, %v321
      %v349 = vmul.f32 %v276, %v321
      %v350 = vmul.f32 %v277, %v321
      %v351 = vmul.f32 %v278, %v321
      %v352 = vmul.f32 %v279, %v321
      %v353 = vmul.f32 %v280, %v321
      %v354 = vmul.f32 %v281, %v321
      %v355 = vmul.f32 %v282, %v321
      %v356 = vmul.f32 %v283, %v321
      %v357 = vmul.f32 %v284, %v321
      %v358 = vmul.f32 %v285, %v321
      %v359 = vmul.f32 %v286, %v321
      %v360 = vmul.f32 %v287, %v321
      %v361 = vmul.f32 %v288, %v321
      %v362 = vmul.f32 %v289, %v321
      %v363 = vmul.f32 %v290, %v321
      %v364 = vmul.f32 %v291, %v321
      %v365 = vmul.f32 %v292, %v321
      %v366 = vmul.f32 %v293, %v321
      %v367 = vmul.f32 %v294, %v321
      %v368 = vmul.f32 %v295, %v321
      %v369 = vmul.f32 %v296, %v321
      %v370 = vmul.f32 %v297, %v321
      %v371 = vmul.f32 %v298, %v321
      %v372 = vmul.f32 %v299, %v321
      %v373 = vmul.f32 %v300, %v321
      %v374 = vmul.f32 %v301, %v321
      %v375 = vmul.f32 %v302, %v321
      %v376 = vmul.f32 %v303, %v321
      %v377 = vmul.f32 %v304, %v321
      %v378 = vmul.f32 %v305, %v321
      %v379 = vmul.f32 %v306, %v321
      %v380 = vmul.f32 %v307, %v321
      %v381 = vmul.f32 %v308, %v321
      %v382 = vmul.f32 %v309, %v321
      %v383 = vmul.f32 %v310, %v321
      %v384 = vmul.f32 %v311, %v321
      %v385 = vmul.f32 %v312, %v321
      %v386 = vmul.f32 %v313, %v321
      %v387 = vmul.f32 %v314, %v321
      %v388 = vmul.f32 %v315, %v321
      %vm389 = vcmask 359424
      %v390 = vsel %vm389, %v323, 0.0
      %391 = vadd.xlane.f32.xlu0 %v390
      %v392 = vpop.xlane.xlu0 %391
      %v393 = vsel %vm389, %v324, 0.0
      %394 = vadd.xlane.f32.xlu0 %v393
      %v395 = vpop.xlane.xlu0 %394
      %v396 = vsel %vm389, %v325, 0.0
      %397 = vadd.xlane.f32.xlu0 %v396
      %v398 = vpop.xlane.xlu0 %397
      %v399 = vsel %vm389, %v326, 0.0
      %400 = vadd.xlane.f32.xlu0 %v399
      %v401 = vpop.xlane.xlu0 %400
      %v402 = vsel %vm389, %v327, 0.0
      %403 = vadd.xlane.f32.xlu0 %v402
      %v404 = vpop.xlane.xlu0 %403
      %v405 = vsel %vm389, %v328, 0.0
      %406 = vadd.xlane.f32.xlu0 %v405
      %v407 = vpop.xlane.xlu0 %406
      %v408 = vsel %vm389, %v329, 0.0
      %409 = vadd.xlane.f32.xlu0 %v408
      %v410 = vpop.xlane.xlu0 %409
      %v411 = vsel %vm389, %v330, 0.0
      %412 = vadd.xlane.f32.xlu0 %v411
      %v413 = vpop.xlane.xlu0 %412
      %v414 = vsel %vm389, %v331, 0.0
      %415 = vadd.xlane.f32.xlu0 %v414
      %v416 = vpop.xlane.xlu0 %415
      %v417 = vsel %vm389, %v332, 0.0
      %418 = vadd.xlane.f32.xlu0 %v417
      %v419 = vpop.xlane.xlu0 %418
      %v420 = vsel %vm389, %v333, 0.0
      %421 = vadd.xlane.f32.xlu0 %v420
      %v422 = vpop.xlane.xlu0 %421
      %v423 = vsel %vm389, %v334, 0.0
      %424 = vadd.xlane.f32.xlu0 %v423
      %v425 = vpop.xlane.xlu0 %424
      %v426 = vsel %vm389, %v335, 0.0
      %427 = vadd.xlane.f32.xlu0 %v426
      %v428 = vpop.xlane.xlu0 %427
      %v429 = vsel %vm389, %v336, 0.0
      %430 = vadd.xlane.f32.xlu0 %v429
      %v431 = vpop.xlane.xlu0 %430
      %v432 = vsel %vm389, %v337, 0.0
      %433 = vadd.xlane.f32.xlu0 %v432
      %v434 = vpop.xlane.xlu0 %433
      %v435 = vsel %vm389, %v338, 0.0
      %436 = vadd.xlane.f32.xlu0 %v435
      %v437 = vpop.xlane.xlu0 %436
      %v438 = vsel %vm389, %v339, 0.0
      %439 = vadd.xlane.f32.xlu0 %v438
      %v440 = vpop.xlane.xlu0 %439
      %v441 = vsel %vm389, %v340, 0.0
      %442 = vadd.xlane.f32.xlu0 %v441
      %v443 = vpop.xlane.xlu0 %442
      %v444 = vsel %vm389, %v341, 0.0
      %445 = vadd.xlane.f32.xlu0 %v444
      %v446 = vpop.xlane.xlu0 %445
      %v447 = vsel %vm389, %v342, 0.0
      %448 = vadd.xlane.f32.xlu0 %v447
      %v449 = vpop.xlane.xlu0 %448
      %v450 = vsel %vm389, %v343, 0.0
      %451 = vadd.xlane.f32.xlu0 %v450
      %v452 = vpop.xlane.xlu0 %451
      %v453 = vsel %vm389, %v344, 0.0
      %454 = vadd.xlane.f32.xlu0 %v453
      %v455 = vpop.xlane.xlu0 %454
      %v456 = vsel %vm389, %v345, 0.0
      %457 = vadd.xlane.f32.xlu0 %v456
      %v458 = vpop.xlane.xlu0 %457
      %v459 = vsel %vm389, %v346, 0.0
      %460 = vadd.xlane.f32.xlu0 %v459
      %v461 = vpop.xlane.xlu0 %460
      %v462 = vsel %vm389, %v347, 0.0
      %463 = vadd.xlane.f32.xlu0 %v462
      %v464 = vpop.xlane.xlu0 %463
      %v465 = vsel %vm389, %v348, 0.0
      %466 = vadd.xlane.f32.xlu0 %v465
      %v467 = vpop.xlane.xlu0 %466
      %v468 = vsel %vm389, %v349, 0.0
      %469 = vadd.xlane.f32.xlu0 %v468
      %v470 = vpop.xlane.xlu0 %469
      %v471 = vsel %vm389, %v350, 0.0
      %472 = vadd.xlane.f32.xlu0 %v471
      %v473 = vpop.xlane.xlu0 %472
      %v474 = vsel %vm389, %v351, 0.0
      %475 = vadd.xlane.f32.xlu0 %v474
      %v476 = vpop.xlane.xlu0 %475
      %v477 = vsel %vm389, %v352, 0.0
      %478 = vadd.xlane.f32.xlu0 %v477
      %v479 = vpop.xlane.xlu0 %478
      %v480 = vsel %vm389, %v353, 0.0
      %481 = vadd.xlane.f32.xlu0 %v480
      %v482 = vpop.xlane.xlu0 %481
      %v483 = vsel %vm389, %v354, 0.0
      %484 = vadd.xlane.f32.xlu0 %v483
      %v485 = vpop.xlane.xlu0 %484
      %v486 = vsel %vm389, %v355, 0.0
      %487 = vadd.xlane.f32.xlu0 %v486
      %v488 = vpop.xlane.xlu0 %487
      %v489 = vsel %vm389, %v356, 0.0
      %490 = vadd.xlane.f32.xlu0 %v489
      %v491 = vpop.xlane.xlu0 %490
      %v492 = vsel %vm389, %v357, 0.0
      %493 = vadd.xlane.f32.xlu0 %v492
      %v494 = vpop.xlane.xlu0 %493
      %v495 = vsel %vm389, %v358, 0.0
      %496 = vadd.xlane.f32.xlu0 %v495
      %v497 = vpop.xlane.xlu0 %496
      %v498 = vsel %vm389, %v359, 0.0
      %499 = vadd.xlane.f32.xlu0 %v498
      %v500 = vpop.xlane.xlu0 %499
      %v501 = vsel %vm389, %v360, 0.0
      %502 = vadd.xlane.f32.xlu0 %v501
      %v503 = vpop.xlane.xlu0 %502
      %v504 = vsel %vm389, %v361, 0.0
      %505 = vadd.xlane.f32.xlu0 %v504
      %v506 = vpop.xlane.xlu0 %505
      %v507 = vsel %vm389, %v362, 0.0
      %508 = vadd.xlane.f32.xlu0 %v507
      %v509 = vpop.xlane.xlu0 %508
      %v510 = vsel %vm389, %v363, 0.0
      %511 = vadd.xlane.f32.xlu0 %v510
      %v512 = vpop.xlane.xlu0 %511
      %v513 = vsel %vm389, %v364, 0.0
      %514 = vadd.xlane.f32.xlu0 %v513
      %v515 = vpop.xlane.xlu0 %514
      %v516 = vsel %vm389, %v365, 0.0
      %517 = vadd.xlane.f32.xlu0 %v516
      %v518 = vpop.xlane.xlu0 %517
      %v519 = vsel %vm389, %v366, 0.0
      %520 = vadd.xlane.f32.xlu0 %v519
      %v521 = vpop.xlane.xlu0 %520
      %v522 = vsel %vm389, %v367, 0.0
      %523 = vadd.xlane.f32.xlu0 %v522
      %v524 = vpop.xlane.xlu0 %523
      %v525 = vsel %vm389, %v368, 0.0
      %526 = vadd.xlane.f32.xlu0 %v525
      %v527 = vpop.xlane.xlu0 %526
      %v528 = vsel %vm389, %v369, 0.0
      %529 = vadd.xlane.f32.xlu0 %v528
      %v530 = vpop.xlane.xlu0 %529
      %v531 = vsel %vm389, %v370, 0.0
      %532 = vadd.xlane.f32.xlu0 %v531
      %v533 = vpop.xlane.xlu0 %532
      %v534 = vsel %vm389, %v371, 0.0
      %535 = vadd.xlane.f32.xlu0 %v534
      %v536 = vpop.xlane.xlu0 %535
      %v537 = vsel %vm389, %v372, 0.0
      %538 = vadd.xlane.f32.xlu0 %v537
      %v539 = vpop.xlane.xlu0 %538
      %v540 = vsel %vm389, %v373, 0.0
      %541 = vadd.xlane.f32.xlu0 %v540
      %v542 = vpop.xlane.xlu0 %541
      %v543 = vsel %vm389, %v374, 0.0
      %544 = vadd.xlane.f32.xlu0 %v543
      %v545 = vpop.xlane.xlu0 %544
      %v546 = vsel %vm389, %v375, 0.0
      %547 = vadd.xlane.f32.xlu0 %v546
      %v548 = vpop.xlane.xlu0 %547
      %v549 = vsel %vm389, %v376, 0.0
      %550 = vadd.xlane.f32.xlu0 %v549
      %v551 = vpop.xlane.xlu0 %550
      %v552 = vsel %vm389, %v377, 0.0
      %553 = vadd.xlane.f32.xlu0 %v552
      %v554 = vpop.xlane.xlu0 %553
      %v555 = vsel %vm389, %v378, 0.0
      %556 = vadd.xlane.f32.xlu0 %v555
      %v557 = vpop.xlane.xlu0 %556
      %v558 = vsel %vm389, %v379, 0.0
      %559 = vadd.xlane.f32.xlu0 %v558
      %v560 = vpop.xlane.xlu0 %559
      %v561 = vsel %vm389, %v380, 0.0
      %562 = vadd.xlane.f32.xlu0 %v561
      %v563 = vpop.xlane.xlu0 %562
      %v564 = vsel %vm389, %v381, 0.0
      %565 = vadd.xlane.f32.xlu0 %v564
      %v566 = vpop.xlane.xlu0 %565
      %v567 = vsel %vm389, %v382, 0.0
      %568 = vadd.xlane.f32.xlu0 %v567
      %v569 = vpop.xlane.xlu0 %568
      %v570 = vsel %vm389, %v383, 0.0
      %571 = vadd.xlane.f32.xlu0 %v570
      %v572 = vpop.xlane.xlu0 %571
      %v573 = vsel %vm389, %v384, 0.0
      %574 = vadd.xlane.f32.xlu0 %v573
      %v575 = vpop.xlane.xlu0 %574
      %v576 = vsel %vm389, %v385, 0.0
      %577 = vadd.xlane.f32.xlu0 %v576
      %v578 = vpop.xlane.xlu0 %577
      %v579 = vsel %vm389, %v386, 0.0
      %580 = vadd.xlane.f32.xlu0 %v579
      %v581 = vpop.xlane.xlu0 %580
      %v582 = vsel %vm389, %v387, 0.0
      %583 = vadd.xlane.f32.xlu0 %v582
      %v584 = vpop.xlane.xlu0 %583
      %v585 = vsel %vm389, %v388, 0.0
      %586 = vadd.xlane.f32.xlu0 %v585
      %v587 = vpop.xlane.xlu0 %586
      %v588 = vld [vmem:[%s234] sm:$0xff]
      %v589 = vld [vmem:[%s234 + $0x8] sm:$0xff]
      %v590 = vld [vmem:[%s234 + $0x10] sm:$0xff]
      %v591 = vld [vmem:[%s234 + $0x18] sm:$0xff]
      %v592 = vld [vmem:[%s234 + $0x20] sm:$0xff]
      %v593 = vld [vmem:[%s234 + $0x28] sm:$0xff]
      %v594 = vld [vmem:[%s234 + $0x30] sm:$0xff]
      %v595 = vld [vmem:[%s234 + $0x38] sm:$0xff]
      %v596 = vld [vmem:[%s234 + $0x40] sm:$0xff]
      %v597 = vld [vmem:[%s234 + $0x48] sm:$0xff]
      %v598 = vld [vmem:[%s234 + $0x50] sm:$0xff]
      %v599 = vld [vmem:[%s234 + $0x58] sm:$0xff]
      %v600 = vld [vmem:[%s234 + $0x60] sm:$0xff]
      %v601 = vld [vmem:[%s234 + $0x68] sm:$0xff]
      %v602 = vld [vmem:[%s234 + $0x70] sm:$0xff]
      %v603 = vld [vmem:[%s234 + $0x78] sm:$0xff]
      %v604 = vld [vmem:[%s234 + $0x80] sm:$0xff]
      %v605 = vld [vmem:[%s234 + $0x88] sm:$0xff]
      %v606 = vld [vmem:[%s234 + $0x90] sm:$0xff]
      %v607 = vld [vmem:[%s234 + $0x98] sm:$0xff]
      %v608 = vld [vmem:[%s234 + $0xa0] sm:$0xff]
      %v609 = vld [vmem:[%s234 + $0xa8] sm:$0xff]
      %v610 = vld [vmem:[%s234 + $0xb0] sm:$0xff]
      %v611 = vld [vmem:[%s234 + $0xb8] sm:$0xff]
      %v612 = vld [vmem:[%s234 + $0xc0] sm:$0xff]
      %v613 = vld [vmem:[%s234 + $0xc8] sm:$0xff]
      %v614 = vld [vmem:[%s234 + $0xd0] sm:$0xff]
      %v615 = vld [vmem:[%s234 + $0xd8] sm:$0xff]
      %v616 = vld [vmem:[%s234 + $0xe0] sm:$0xff]
      %v617 = vld [vmem:[%s234 + $0xe8] sm:$0xff]
      %v618 = vld [vmem:[%s234 + $0xf0] sm:$0xff]
      %v619 = vld [vmem:[%s234 + $0xf8] sm:$0xff]
      %v620 = vld [vmem:[%s234 + $0x100] sm:$0xff]
      %v621 = vld [vmem:[%s234 + $0x108] sm:$0xff]
      %v622 = vld [vmem:[%s234 + $0x110] sm:$0xff]
      %v623 = vld [vmem:[%s234 + $0x118] sm:$0xff]
      %v624 = vld [vmem:[%s234 + $0x120] sm:$0xff]
      %v625 = vld [vmem:[%s234 + $0x128] sm:$0xff]
      %v626 = vld [vmem:[%s234 + $0x130] sm:$0xff]
      %v627 = vld [vmem:[%s234 + $0x138] sm:$0xff]
      %v628 = vld [vmem:[%s234 + $0x140] sm:$0xff]
      %v629 = vld [vmem:[%s234 + $0x148] sm:$0xff]
      %v630 = vld [vmem:[%s234 + $0x150] sm:$0xff]
      %v631 = vld [vmem:[%s234 + $0x158] sm:$0xff]
      %v632 = vld [vmem:[%s234 + $0x160] sm:$0xff]
      %v633 = vld [vmem:[%s234 + $0x168] sm:$0xff]
      %v634 = vld [vmem:[%s234 + $0x170] sm:$0xff]
      %v635 = vld [vmem:[%s234 + $0x178] sm:$0xff]
      %v636 = vld [vmem:[%s234 + $0x180] sm:$0xff]
      %v637 = vld [vmem:[%s234 + $0x188] sm:$0xff]
      %v638 = vld [vmem:[%s234 + $0x190] sm:$0xff]
      %v639 = vld [vmem:[%s234 + $0x198] sm:$0xff]
      %v640 = vld [vmem:[%s234 + $0x1a0] sm:$0xff]
      %v641 = vld [vmem:[%s234 + $0x1a8] sm:$0xff]
      %v642 = vld [vmem:[%s234 + $0x1b0] sm:$0xff]
      %v643 = vld [vmem:[%s234 + $0x1b8] sm:$0xff]
      %v644 = vld [vmem:[%s234 + $0x1c0] sm:$0xff]
      %v645 = vld [vmem:[%s234 + $0x1c8] sm:$0xff]
      %v646 = vld [vmem:[%s234 + $0x1d0] sm:$0xff]
      %v647 = vld [vmem:[%s234 + $0x1d8] sm:$0xff]
      %v648 = vld [vmem:[%s234 + $0x1e0] sm:$0xff]
      %v649 = vld [vmem:[%s234 + $0x1e8] sm:$0xff]
      %v650 = vld [vmem:[%s234 + $0x1f0] sm:$0xff]
      %v651 = vld [vmem:[%s234 + $0x1f8] sm:$0xff]
      %v652 = vld [vmem:[%s234 + $0x200] sm:$0xff]
      %v653 = vld [vmem:[%s234 + $0x208] sm:$0xff]
      %v654 = vadd.f32 %v392, %v588
      %v655 = vadd.f32 %v395, %v589
      %v656 = vadd.f32 %v398, %v590
      %v657 = vadd.f32 %v401, %v591
      %v658 = vadd.f32 %v404, %v592
      %v659 = vadd.f32 %v407, %v593
      %v660 = vadd.f32 %v410, %v594
      %v661 = vadd.f32 %v413, %v595
      %v662 = vadd.f32 %v416, %v596
      %v663 = vadd.f32 %v419, %v597
      %v664 = vadd.f32 %v422, %v598
      %v665 = vadd.f32 %v425, %v599
      %v666 = vadd.f32 %v428, %v600
      %v667 = vadd.f32 %v431, %v601
      %v668 = vadd.f32 %v434, %v602
      %v669 = vadd.f32 %v437, %v603
      %v670 = vadd.f32 %v440, %v604
      %v671 = vadd.f32 %v443, %v605
      %v672 = vadd.f32 %v446, %v606
      %v673 = vadd.f32 %v449, %v607
      %v674 = vadd.f32 %v452, %v608
      %v675 = vadd.f32 %v455, %v609
      %v676 = vadd.f32 %v458, %v610
      %v677 = vadd.f32 %v461, %v611
      %v678 = vadd.f32 %v464, %v612
      %v679 = vadd.f32 %v467, %v613
      %v680 = vadd.f32 %v470, %v614
      %v681 = vadd.f32 %v473, %v615
      %v682 = vadd.f32 %v476, %v616
      %v683 = vadd.f32 %v479, %v617
      %v684 = vadd.f32 %v482, %v618
      %v685 = vadd.f32 %v485, %v619
      %v686 = vadd.f32 %v488, %v620
      %v687 = vadd.f32 %v491, %v621
      %v688 = vadd.f32 %v494, %v622
      %v689 = vadd.f32 %v497, %v623
      %v690 = vadd.f32 %v500, %v624
      %v691 = vadd.f32 %v503, %v625
      %v692 = vadd.f32 %v506, %v626
      %v693 = vadd.f32 %v509, %v627
      %v694 = vadd.f32 %v512, %v628
      %v695 = vadd.f32 %v515, %v629
      %v696 = vadd.f32 %v518, %v630
      %v697 = vadd.f32 %v521, %v631
      %v698 = vadd.f32 %v524, %v632
      %v699 = vadd.f32 %v527, %v633
      %v700 = vadd.f32 %v530, %v634
      %v701 = vadd.f32 %v533, %v635
      %v702 = vadd.f32 %v536, %v636
      %v703 = vadd.f32 %v539, %v637
      %v704 = vadd.f32 %v542, %v638
      %v705 = vadd.f32 %v545, %v639
      %v706 = vadd.f32 %v548, %v640
      %v707 = vadd.f32 %v551, %v641
      %v708 = vadd.f32 %v554, %v642
      %v709 = vadd.f32 %v557, %v643
      %v710 = vadd.f32 %v560, %v644
      %v711 = vadd.f32 %v563, %v645
      %v712 = vadd.f32 %v566, %v646
      %v713 = vadd.f32 %v569, %v647
      %v714 = vadd.f32 %v572, %v648
      %v715 = vadd.f32 %v575, %v649
      %v716 = vadd.f32 %v578, %v650
      %v717 = vadd.f32 %v581, %v651
      %v718 = vadd.f32 %v584, %v652
      %v719 = vadd.f32 %v587, %v653
      %v720 = vxor.u32 %v654, 2147483648
      %v721 = vxor.u32 %v655, 2147483648
      %v722 = vxor.u32 %v656, 2147483648
      %v723 = vxor.u32 %v657, 2147483648
      %v724 = vxor.u32 %v658, 2147483648
      %v725 = vxor.u32 %v659, 2147483648
      %v726 = vxor.u32 %v660, 2147483648
      %v727 = vxor.u32 %v661, 2147483648
      %v728 = vxor.u32 %v662, 2147483648
      %v729 = vxor.u32 %v663, 2147483648
      %v730 = vxor.u32 %v664, 2147483648
      %v731 = vxor.u32 %v665, 2147483648
      %v732 = vxor.u32 %v666, 2147483648
      %v733 = vxor.u32 %v667, 2147483648
      %v734 = vxor.u32 %v668, 2147483648
      %v735 = vxor.u32 %v669, 2147483648
      %v736 = vxor.u32 %v670, 2147483648
      %v737 = vxor.u32 %v671, 2147483648
      %v738 = vxor.u32 %v672, 2147483648
      %v739 = vxor.u32 %v673, 2147483648
      %v740 = vxor.u32 %v674, 2147483648
      %v741 = vxor.u32 %v675, 2147483648
      %v742 = vxor.u32 %v676, 2147483648
      %v743 = vxor.u32 %v677, 2147483648
      %v744 = vxor.u32 %v678, 2147483648
      %v745 = vxor.u32 %v679, 2147483648
      %v746 = vxor.u32 %v680, 2147483648
      %v747 = vxor.u32 %v681, 2147483648
      %v748 = vxor.u32 %v682, 2147483648
      %v749 = vxor.u32 %v683, 2147483648
      %v750 = vxor.u32 %v684, 2147483648
      %v751 = vxor.u32 %v685, 2147483648
      %v752 = vxor.u32 %v686, 2147483648
      %v753 = vxor.u32 %v687, 2147483648
      %v754 = vxor.u32 %v688, 2147483648
      %v755 = vxor.u32 %v689, 2147483648
      %v756 = vxor.u32 %v690, 2147483648
      %v757 = vxor.u32 %v691, 2147483648
      %v758 = vxor.u32 %v692, 2147483648
      %v759 = vxor.u32 %v693, 2147483648
      %v760 = vxor.u32 %v694, 2147483648
      %v761 = vxor.u32 %v695, 2147483648
      %v762 = vxor.u32 %v696, 2147483648
      %v763 = vxor.u32 %v697, 2147483648
      %v764 = vxor.u32 %v698, 2147483648
      %v765 = vxor.u32 %v699, 2147483648
      %v766 = vxor.u32 %v700, 2147483648
      %v767 = vxor.u32 %v701, 2147483648
      %v768 = vxor.u32 %v702, 2147483648
      %v769 = vxor.u32 %v703, 2147483648
      %v770 = vxor.u32 %v704, 2147483648
      %v771 = vxor.u32 %v705, 2147483648
      %v772 = vxor.u32 %v706, 2147483648
      %v773 = vxor.u32 %v707, 2147483648
      %v774 = vxor.u32 %v708, 2147483648
      %v775 = vxor.u32 %v709, 2147483648
      %v776 = vxor.u32 %v710, 2147483648
      %v777 = vxor.u32 %v711, 2147483648
      %v778 = vxor.u32 %v712, 2147483648
      %v779 = vxor.u32 %v713, 2147483648
      %v780 = vxor.u32 %v714, 2147483648
      %v781 = vxor.u32 %v715, 2147483648
      %v782 = vxor.u32 %v716, 2147483648
      %v783 = vxor.u32 %v717, 2147483648
      %v784 = vxor.u32 %v718, 2147483648
      %v785 = vxor.u32 %v719, 2147483648
      %v786 = vmul.f32 %v720, 1.442695
      %v787 = vpow.pop %v786
      %v788 = vmul.f32 %v721, 1.442695
      %v789 = vpow.pop %v788
      %v790 = vmul.f32 %v722, 1.442695
      %v791 = vpow.pop %v790
      %v792 = vmul.f32 %v723, 1.442695
      %v793 = vpow.pop %v792
      %v794 = vmul.f32 %v724, 1.442695
      %v795 = vpow.pop %v794
      %v796 = vmul.f32 %v725, 1.442695
      %v797 = vpow.pop %v796
      %v798 = vmul.f32 %v726, 1.442695
      %v799 = vpow.pop %v798
      %v800 = vmul.f32 %v727, 1.442695
      %v801 = vpow.pop %v800
      %v802 = vmul.f32 %v728, 1.442695
      %v803 = vpow.pop %v802
      %v804 = vmul.f32 %v729, 1.442695
      %v805 = vpow.pop %v804
      %v806 = vmul.f32 %v730, 1.442695
      %v807 = vpow.pop %v806
      %v808 = vmul.f32 %v731, 1.442695
      %v809 = vpow.pop %v808
      %v810 = vmul.f32 %v732, 1.442695
      %v811 = vpow.pop %v810
      %v812 = vmul.f32 %v733, 1.442695
      %v813 = vpow.pop %v812
      %v814 = vmul.f32 %v734, 1.442695
      %v815 = vpow.pop %v814
      %v816 = vmul.f32 %v735, 1.442695
      %v817 = vpow.pop %v816
      %v818 = vmul.f32 %v736, 1.442695
      %v819 = vpow.pop %v818
      %v820 = vmul.f32 %v737, 1.442695
      %v821 = vpow.pop %v820
      %v822 = vmul.f32 %v738, 1.442695
      %v823 = vpow.pop %v822
      %v824 = vmul.f32 %v739, 1.442695
      %v825 = vpow.pop %v824
      %v826 = vmul.f32 %v740, 1.442695
      %v827 = vpow.pop %v826
      %v828 = vmul.f32 %v741, 1.442695
      %v829 = vpow.pop %v828
      %v830 = vmul.f32 %v742, 1.442695
      %v831 = vpow.pop %v830
      %v832 = vmul.f32 %v743, 1.442695
      %v833 = vpow.pop %v832
      %v834 = vmul.f32 %v744, 1.442695
      %v835 = vpow.pop %v834
      %v836 = vmul.f32 %v745, 1.442695
      %v837 = vpow.pop %v836
      %v838 = vmul.f32 %v746, 1.442695
      %v839 = vpow.pop %v838
      %v840 = vmul.f32 %v747, 1.442695
      %v841 = vpow.pop %v840
      %v842 = vmul.f32 %v748, 1.442695
      %v843 = vpow.pop %v842
      %v844 = vmul.f32 %v749, 1.442695
      %v845 = vpow.pop %v844
      %v846 = vmul.f32 %v750, 1.442695
      %v847 = vpow.pop %v846
      %v848 = vmul.f32 %v751, 1.442695
      %v849 = vpow.pop %v848
      %v850 = vmul.f32 %v752, 1.442695
      %v851 = vpow.pop %v850
      %v852 = vmul.f32 %v753, 1.442695
      %v853 = vpow.pop %v852
      %v854 = vmul.f32 %v754, 1.442695
      %v855 = vpow.pop %v854
      %v856 = vmul.f32 %v755, 1.442695
      %v857 = vpow.pop %v856
      %v858 = vmul.f32 %v756, 1.442695
      %v859 = vpow.pop %v858
      %v860 = vmul.f32 %v757, 1.442695
      %v861 = vpow.pop %v860
      %v862 = vmul.f32 %v758, 1.442695
      %v863 = vpow.pop %v862
      %v864 = vmul.f32 %v759, 1.442695
      %v865 = vpow.pop %v864
      %v866 = vmul.f32 %v760, 1.442695
      %v867 = vpow.pop %v866
      %v868 = vmul.f32 %v761, 1.442695
      %v869 = vpow.pop %v868
      %v870 = vmul.f32 %v762, 1.442695
      %v871 = vpow.pop %v870
      %v872 = vmul.f32 %v763, 1.442695
      %v873 = vpow.pop %v872
      %v874 = vmul.f32 %v764, 1.442695
      %v875 = vpow.pop %v874
      %v876 = vmul.f32 %v765, 1.442695
      %v877 = vpow.pop %v876
      %v878 = vmul.f32 %v766, 1.442695
      %v879 = vpow.pop %v878
      %v880 = vmul.f32 %v767, 1.442695
      %v881 = vpow.pop %v880
      %v882 = vmul.f32 %v768, 1.442695
      %v883 = vpow.pop %v882
      %v884 = vmul.f32 %v769, 1.442695
      %v885 = vpow.pop %v884
      %v886 = vmul.f32 %v770, 1.442695
      %v887 = vpow.pop %v886
      %v888 = vmul.f32 %v771, 1.442695
      %v889 = vpow.pop %v888
      %v890 = vmul.f32 %v772, 1.442695
      %v891 = vpow.pop %v890
      %v892 = vmul.f32 %v773, 1.442695
      %v893 = vpow.pop %v892
      %v894 = vmul.f32 %v774, 1.442695
      %v895 = vpow.pop %v894
      %v896 = vmul.f32 %v775, 1.442695
      %v897 = vpow.pop %v896
      %v898 = vmul.f32 %v776, 1.442695
      %v899 = vpow.pop %v898
      %v900 = vmul.f32 %v777, 1.442695
      %v901 = vpow.pop %v900
      %v902 = vmul.f32 %v778, 1.442695
      %v903 = vpow.pop %v902
      %v904 = vmul.f32 %v779, 1.442695
      %v905 = vpow.pop %v904
      %v906 = vmul.f32 %v780, 1.442695
      %v907 = vpow.pop %v906
      %v908 = vmul.f32 %v781, 1.442695
      %v909 = vpow.pop %v908
      %v910 = vmul.f32 %v782, 1.442695
      %v911 = vpow.pop %v910
      %v912 = vmul.f32 %v783, 1.442695
      %v913 = vpow.pop %v912
      %v914 = vmul.f32 %v784, 1.442695
      %v915 = vpow.pop %v914
      %v916 = vmul.f32 %v785, 1.442695
      %v917 = vpow.pop %v916
      %v918 = vadd.f32 %v787, 1.0
      %v919 = vadd.f32 %v789, 1.0
      %v920 = vadd.f32 %v791, 1.0
      %v921 = vadd.f32 %v793, 1.0
      %v922 = vadd.f32 %v795, 1.0
      %v923 = vadd.f32 %v797, 1.0
      %v924 = vadd.f32 %v799, 1.0
      %v925 = vadd.f32 %v801, 1.0
      %v926 = vadd.f32 %v803, 1.0
      %v927 = vadd.f32 %v805, 1.0
      %v928 = vadd.f32 %v807, 1.0
      %v929 = vadd.f32 %v809, 1.0
      %v930 = vadd.f32 %v811, 1.0
      %v931 = vadd.f32 %v813, 1.0
      %v932 = vadd.f32 %v815, 1.0
      %v933 = vadd.f32 %v817, 1.0
      %v934 = vadd.f32 %v819, 1.0
      %v935 = vadd.f32 %v821, 1.0
      %v936 = vadd.f32 %v823, 1.0
      %v937 = vadd.f32 %v825, 1.0
      %v938 = vadd.f32 %v827, 1.0
      %v939 = vadd.f32 %v829, 1.0
      %v940 = vadd.f32 %v831, 1.0
      %v941 = vadd.f32 %v833, 1.0
      %v942 = vadd.f32 %v835, 1.0
      %v943 = vadd.f32 %v837, 1.0
      %v944 = vadd.f32 %v839, 1.0
      %v945 = vadd.f32 %v841, 1.0
      %v946 = vadd.f32 %v843, 1.0
      %v947 = vadd.f32 %v845, 1.0
      %v948 = vadd.f32 %v847, 1.0
      %v949 = vadd.f32 %v849, 1.0
      %v950 = vadd.f32 %v851, 1.0
      %v951 = vadd.f32 %v853, 1.0
      %v952 = vadd.f32 %v855, 1.0
      %v953 = vadd.f32 %v857, 1.0
      %v954 = vadd.f32 %v859, 1.0
      %v955 = vadd.f32 %v861, 1.0
      %v956 = vadd.f32 %v863, 1.0
      %v957 = vadd.f32 %v865, 1.0
      %v958 = vadd.f32 %v867, 1.0
      %v959 = vadd.f32 %v869, 1.0
      %v960 = vadd.f32 %v871, 1.0
      %v961 = vadd.f32 %v873, 1.0
      %v962 = vadd.f32 %v875, 1.0
      %v963 = vadd.f32 %v877, 1.0
      %v964 = vadd.f32 %v879, 1.0
      %v965 = vadd.f32 %v881, 1.0
      %v966 = vadd.f32 %v883, 1.0
      %v967 = vadd.f32 %v885, 1.0
      %v968 = vadd.f32 %v887, 1.0
      %v969 = vadd.f32 %v889, 1.0
      %v970 = vadd.f32 %v891, 1.0
      %v971 = vadd.f32 %v893, 1.0
      %v972 = vadd.f32 %v895, 1.0
      %v973 = vadd.f32 %v897, 1.0
      %v974 = vadd.f32 %v899, 1.0
      %v975 = vadd.f32 %v901, 1.0
      %v976 = vadd.f32 %v903, 1.0
      %v977 = vadd.f32 %v905, 1.0
      %v978 = vadd.f32 %v907, 1.0
      %v979 = vadd.f32 %v909, 1.0
      %v980 = vadd.f32 %v911, 1.0
      %v981 = vadd.f32 %v913, 1.0
      %v982 = vadd.f32 %v915, 1.0
      %v983 = vadd.f32 %v917, 1.0
      %v984 = vrcp.pop %v918
      %v985 = vmul.f32 1.0, %v984
      %v986 = vrcp.pop %v919
      %v987 = vmul.f32 1.0, %v986
      %v988 = vrcp.pop %v920
      %v989 = vmul.f32 1.0, %v988
      %v990 = vrcp.pop %v921
      %v991 = vmul.f32 1.0, %v990
      %v992 = vrcp.pop %v922
      %v993 = vmul.f32 1.0, %v992
      %v994 = vrcp.pop %v923
      %v995 = vmul.f32 1.0, %v994
      %v996 = vrcp.pop %v924
      %v997 = vmul.f32 1.0, %v996
      %v998 = vrcp.pop %v925
      %v999 = vmul.f32 1.0, %v998
      %v1000 = vrcp.pop %v926
      %v1001 = vmul.f32 1.0, %v1000
      %v1002 = vrcp.pop %v927
      %v1003 = vmul.f32 1.0, %v1002
      %v1004 = vrcp.pop %v928
      %v1005 = vmul.f32 1.0, %v1004
      %v1006 = vrcp.pop %v929
      %v1007 = vmul.f32 1.0, %v1006
      %v1008 = vrcp.pop %v930
      %v1009 = vmul.f32 1.0, %v1008
      %v1010 = vrcp.pop %v931
      %v1011 = vmul.f32 1.0, %v1010
      %v1012 = vrcp.pop %v932
      %v1013 = vmul.f32 1.0, %v1012
      %v1014 = vrcp.pop %v933
      %v1015 = vmul.f32 1.0, %v1014
      %v1016 = vrcp.pop %v934
      %v1017 = vmul.f32 1.0, %v1016
      %v1018 = vrcp.pop %v935
      %v1019 = vmul.f32 1.0, %v1018
      %v1020 = vrcp.pop %v936
      %v1021 = vmul.f32 1.0, %v1020
      %v1022 = vrcp.pop %v937
      %v1023 = vmul.f32 1.0, %v1022
      %v1024 = vrcp.pop %v938
      %v1025 = vmul.f32 1.0, %v1024
      %v1026 = vrcp.pop %v939
      %v1027 = vmul.f32 1.0, %v1026
      %v1028 = vrcp.pop %v940
      %v1029 = vmul.f32 1.0, %v1028
      %v1030 = vrcp.pop %v941
      %v1031 = vmul.f32 1.0, %v1030
      %v1032 = vrcp.pop %v942
      %v1033 = vmul.f32 1.0, %v1032
      %v1034 = vrcp.pop %v943
      %v1035 = vmul.f32 1.0, %v1034
      %v1036 = vrcp.pop %v944
      %v1037 = vmul.f32 1.0, %v1036
      %v1038 = vrcp.pop %v945
      %v1039 = vmul.f32 1.0, %v1038
      %v1040 = vrcp.pop %v946
      %v1041 = vmul.f32 1.0, %v1040
      %v1042 = vrcp.pop %v947
      %v1043 = vmul.f32 1.0, %v1042
      %v1044 = vrcp.pop %v948
      %v1045 = vmul.f32 1.0, %v1044
      %v1046 = vrcp.pop %v949
      %v1047 = vmul.f32 1.0, %v1046
      %v1048 = vrcp.pop %v950
      %v1049 = vmul.f32 1.0, %v1048
      %v1050 = vrcp.pop %v951
      %v1051 = vmul.f32 1.0, %v1050
      %v1052 = vrcp.pop %v952
      %v1053 = vmul.f32 1.0, %v1052
      %v1054 = vrcp.pop %v953
      %v1055 = vmul.f32 1.0, %v1054
      %v1056 = vrcp.pop %v954
      %v1057 = vmul.f32 1.0, %v1056
      %v1058 = vrcp.pop %v955
      %v1059 = vmul.f32 1.0, %v1058
      %v1060 = vrcp.pop %v956
      %v1061 = vmul.f32 1.0, %v1060
      %v1062 = vrcp.pop %v957
      %v1063 = vmul.f32 1.0, %v1062
      %v1064 = vrcp.pop %v958
      %v1065 = vmul.f32 1.0, %v1064
      %v1066 = vrcp.pop %v959
      %v1067 = vmul.f32 1.0, %v1066
      %v1068 = vrcp.pop %v960
      %v1069 = vmul.f32 1.0, %v1068
      %v1070 = vrcp.pop %v961
      %v1071 = vmul.f32 1.0, %v1070
      %v1072 = vrcp.pop %v962
      %v1073 = vmul.f32 1.0, %v1072
      %v1074 = vrcp.pop %v963
      %v1075 = vmul.f32 1.0, %v1074
      %v1076 = vrcp.pop %v964
      %v1077 = vmul.f32 1.0, %v1076
      %v1078 = vrcp.pop %v965
      %v1079 = vmul.f32 1.0, %v1078
      %v1080 = vrcp.pop %v966
      %v1081 = vmul.f32 1.0, %v1080
      %v1082 = vrcp.pop %v967
      %v1083 = vmul.f32 1.0, %v1082
      %v1084 = vrcp.pop %v968
      %v1085 = vmul.f32 1.0, %v1084
      %v1086 = vrcp.pop %v969
      %v1087 = vmul.f32 1.0, %v1086
      %v1088 = vrcp.pop %v970
      %v1089 = vmul.f32 1.0, %v1088
      %v1090 = vrcp.pop %v971
      %v1091 = vmul.f32 1.0, %v1090
      %v1092 = vrcp.pop %v972
      %v1093 = vmul.f32 1.0, %v1092
      %v1094 = vrcp.pop %v973
      %v1095 = vmul.f32 1.0, %v1094
      %v1096 = vrcp.pop %v974
      %v1097 = vmul.f32 1.0, %v1096
      %v1098 = vrcp.pop %v975
      %v1099 = vmul.f32 1.0, %v1098
      %v1100 = vrcp.pop %v976
      %v1101 = vmul.f32 1.0, %v1100
      %v1102 = vrcp.pop %v977
      %v1103 = vmul.f32 1.0, %v1102
      %v1104 = vrcp.pop %v978
      %v1105 = vmul.f32 1.0, %v1104
      %v1106 = vrcp.pop %v979
      %v1107 = vmul.f32 1.0, %v1106
      %v1108 = vrcp.pop %v980
      %v1109 = vmul.f32 1.0, %v1108
      %v1110 = vrcp.pop %v981
      %v1111 = vmul.f32 1.0, %v1110
      %v1112 = vrcp.pop %v982
      %v1113 = vmul.f32 1.0, %v1112
      %v1114 = vrcp.pop %v983
      %v1115 = vmul.f32 1.0, %v1114
      %v1116 = vld [vmem:[%s241] sm:$0xff]
      %v1117 = vld [vmem:[%s241 + $0x8] sm:$0xff]
      %v1118 = vld [vmem:[%s241 + $0x10] sm:$0xff]
      %v1119 = vld [vmem:[%s241 + $0x18] sm:$0xff]
      %v1120 = vld [vmem:[%s241 + $0x20] sm:$0xff]
      %v1121 = vld [vmem:[%s241 + $0x28] sm:$0xff]
      %v1122 = vld [vmem:[%s241 + $0x30] sm:$0xff]
      %v1123 = vld [vmem:[%s241 + $0x38] sm:$0xff]
      %v1124 = vld [vmem:[%s241 + $0x40] sm:$0xff]
      %v1125 = vld [vmem:[%s241 + $0x48] sm:$0xff]
      %v1126 = vld [vmem:[%s241 + $0x50] sm:$0xff]
      %v1127 = vld [vmem:[%s241 + $0x58] sm:$0xff]
      %v1128 = vld [vmem:[%s241 + $0x60] sm:$0xff]
      %v1129 = vld [vmem:[%s241 + $0x68] sm:$0xff]
      %v1130 = vld [vmem:[%s241 + $0x70] sm:$0xff]
      %v1131 = vld [vmem:[%s241 + $0x78] sm:$0xff]
      %v1132 = vld [vmem:[%s241 + $0x80] sm:$0xff]
      %v1133 = vld [vmem:[%s241 + $0x88] sm:$0xff]
      %v1134 = vld [vmem:[%s241 + $0x90] sm:$0xff]
      %v1135 = vld [vmem:[%s241 + $0x98] sm:$0xff]
      %v1136 = vld [vmem:[%s241 + $0xa0] sm:$0xff]
      %v1137 = vld [vmem:[%s241 + $0xa8] sm:$0xff]
      %v1138 = vld [vmem:[%s241 + $0xb0] sm:$0xff]
      %v1139 = vld [vmem:[%s241 + $0xb8] sm:$0xff]
      %v1140 = vld [vmem:[%s241 + $0xc0] sm:$0xff]
      %v1141 = vld [vmem:[%s241 + $0xc8] sm:$0xff]
      %v1142 = vld [vmem:[%s241 + $0xd0] sm:$0xff]
      %v1143 = vld [vmem:[%s241 + $0xd8] sm:$0xff]
      %v1144 = vld [vmem:[%s241 + $0xe0] sm:$0xff]
      %v1145 = vld [vmem:[%s241 + $0xe8] sm:$0xff]
      %v1146 = vld [vmem:[%s241 + $0xf0] sm:$0xff]
      %v1147 = vld [vmem:[%s241 + $0xf8] sm:$0xff]
      %v1148 = vld [vmem:[%s241 + $0x100] sm:$0xff]
      %v1149 = vld [vmem:[%s241 + $0x108] sm:$0xff]
      %v1150 = vld [vmem:[%s241 + $0x110] sm:$0xff]
      %v1151 = vld [vmem:[%s241 + $0x118] sm:$0xff]
      %v1152 = vld [vmem:[%s241 + $0x120] sm:$0xff]
      %v1153 = vld [vmem:[%s241 + $0x128] sm:$0xff]
      %v1154 = vld [vmem:[%s241 + $0x130] sm:$0xff]
      %v1155 = vld [vmem:[%s241 + $0x138] sm:$0xff]
      %v1156 = vld [vmem:[%s241 + $0x140] sm:$0xff]
      %v1157 = vld [vmem:[%s241 + $0x148] sm:$0xff]
      %v1158 = vld [vmem:[%s241 + $0x150] sm:$0xff]
      %v1159 = vld [vmem:[%s241 + $0x158] sm:$0xff]
      %v1160 = vld [vmem:[%s241 + $0x160] sm:$0xff]
      %v1161 = vld [vmem:[%s241 + $0x168] sm:$0xff]
      %v1162 = vld [vmem:[%s241 + $0x170] sm:$0xff]
      %v1163 = vld [vmem:[%s241 + $0x178] sm:$0xff]
      %v1164 = vld [vmem:[%s241 + $0x180] sm:$0xff]
      %v1165 = vld [vmem:[%s241 + $0x188] sm:$0xff]
      %v1166 = vld [vmem:[%s241 + $0x190] sm:$0xff]
      %v1167 = vld [vmem:[%s241 + $0x198] sm:$0xff]
      %v1168 = vld [vmem:[%s241 + $0x1a0] sm:$0xff]
      %v1169 = vld [vmem:[%s241 + $0x1a8] sm:$0xff]
      %v1170 = vld [vmem:[%s241 + $0x1b0] sm:$0xff]
      %v1171 = vld [vmem:[%s241 + $0x1b8] sm:$0xff]
      %v1172 = vld [vmem:[%s241 + $0x1c0] sm:$0xff]
      %v1173 = vld [vmem:[%s241 + $0x1c8] sm:$0xff]
      %v1174 = vld [vmem:[%s241 + $0x1d0] sm:$0xff]
      %v1175 = vld [vmem:[%s241 + $0x1d8] sm:$0xff]
      %v1176 = vld [vmem:[%s241 + $0x1e0] sm:$0xff]
      %v1177 = vld [vmem:[%s241 + $0x1e8] sm:$0xff]
      %v1178 = vld [vmem:[%s241 + $0x1f0] sm:$0xff]
      %v1179 = vld [vmem:[%s241 + $0x1f8] sm:$0xff]
      %v1180 = vld [vmem:[%s241 + $0x200] sm:$0xff]
      %v1181 = vld [vmem:[%s241 + $0x208] sm:$0xff]
      %v1182 = vld [vmem:[%s241 + $0x210] sm:$0xff]
      %v1183 = vld [vmem:[%s241 + $0x218] sm:$0xff]
      %v1184 = vld [vmem:[%s241 + $0x220] sm:$0xff]
      %v1185 = vld [vmem:[%s241 + $0x228] sm:$0xff]
      %v1186 = vld [vmem:[%s241 + $0x230] sm:$0xff]
      %v1187 = vld [vmem:[%s241 + $0x238] sm:$0xff]
      %v1188 = vld [vmem:[%s241 + $0x240] sm:$0xff]
      %v1189 = vld [vmem:[%s241 + $0x248] sm:$0xff]
      %v1190 = vld [vmem:[%s241 + $0x250] sm:$0xff]
      %v1191 = vld [vmem:[%s241 + $0x258] sm:$0xff]
      %v1192 = vld [vmem:[%s241 + $0x260] sm:$0xff]
      %v1193 = vld [vmem:[%s241 + $0x268] sm:$0xff]
      %v1194 = vld [vmem:[%s241 + $0x270] sm:$0xff]
      %v1195 = vld [vmem:[%s241 + $0x278] sm:$0xff]
      %v1196 = vld [vmem:[%s241 + $0x280] sm:$0xff]
      %v1197 = vld [vmem:[%s241 + $0x288] sm:$0xff]
      %v1198 = vld [vmem:[%s241 + $0x290] sm:$0xff]
      %v1199 = vld [vmem:[%s241 + $0x298] sm:$0xff]
      %v1200 = vld [vmem:[%s241 + $0x2a0] sm:$0xff]
      %v1201 = vld [vmem:[%s241 + $0x2a8] sm:$0xff]
      %v1202 = vld [vmem:[%s241 + $0x2b0] sm:$0xff]
      %v1203 = vld [vmem:[%s241 + $0x2b8] sm:$0xff]
      %v1204 = vld [vmem:[%s241 + $0x2c0] sm:$0xff]
      %v1205 = vld [vmem:[%s241 + $0x2c8] sm:$0xff]
      %v1206 = vld [vmem:[%s241 + $0x2d0] sm:$0xff]
      %v1207 = vld [vmem:[%s241 + $0x2d8] sm:$0xff]
      %v1208 = vld [vmem:[%s241 + $0x2e0] sm:$0xff]
      %v1209 = vld [vmem:[%s241 + $0x2e8] sm:$0xff]
      %v1210 = vld [vmem:[%s241 + $0x2f0] sm:$0xff]
      %v1211 = vld [vmem:[%s241 + $0x2f8] sm:$0xff]
      %v1212 = vld [vmem:[%s241 + $0x300] sm:$0xff]
      %v1213 = vld [vmem:[%s241 + $0x308] sm:$0xff]
      %v1214 = vld [vmem:[%s241 + $0x310] sm:$0xff]
      %v1215 = vld [vmem:[%s241 + $0x318] sm:$0xff]
      %v1216 = vld [vmem:[%s241 + $0x320] sm:$0xff]
      %v1217 = vld [vmem:[%s241 + $0x328] sm:$0xff]
      %v1218 = vld [vmem:[%s241 + $0x330] sm:$0xff]
      %v1219 = vld [vmem:[%s241 + $0x338] sm:$0xff]
      %v1220 = vld [vmem:[%s241 + $0x340] sm:$0xff]
      %v1221 = vld [vmem:[%s241 + $0x348] sm:$0xff]
      %v1222 = vld [vmem:[%s241 + $0x350] sm:$0xff]
      %v1223 = vld [vmem:[%s241 + $0x358] sm:$0xff]
      %v1224 = vld [vmem:[%s241 + $0x360] sm:$0xff]
      %v1225 = vld [vmem:[%s241 + $0x368] sm:$0xff]
      %v1226 = vld [vmem:[%s241 + $0x370] sm:$0xff]
      %v1227 = vld [vmem:[%s241 + $0x378] sm:$0xff]
      %v1228 = vld [vmem:[%s241 + $0x380] sm:$0xff]
      %v1229 = vld [vmem:[%s241 + $0x388] sm:$0xff]
      %v1230 = vld [vmem:[%s241 + $0x390] sm:$0xff]
      %v1231 = vld [vmem:[%s241 + $0x398] sm:$0xff]
      %v1232 = vld [vmem:[%s241 + $0x3a0] sm:$0xff]
      %v1233 = vld [vmem:[%s241 + $0x3a8] sm:$0xff]
      %v1234 = vld [vmem:[%s241 + $0x3b0] sm:$0xff]
      %v1235 = vld [vmem:[%s241 + $0x3b8] sm:$0xff]
      %v1236 = vld [vmem:[%s241 + $0x3c0] sm:$0xff]
      %v1237 = vld [vmem:[%s241 + $0x3c8] sm:$0xff]
      %v1238 = vld [vmem:[%s241 + $0x3d0] sm:$0xff]
      %v1239 = vld [vmem:[%s241 + $0x3d8] sm:$0xff]
      %v1240 = vld [vmem:[%s241 + $0x3e0] sm:$0xff]
      %v1241 = vld [vmem:[%s241 + $0x3e8] sm:$0xff]
      %v1242 = vld [vmem:[%s241 + $0x3f0] sm:$0xff]
      %v1243 = vld [vmem:[%s241 + $0x3f8] sm:$0xff]
      %v1244 = vld [vmem:[%s241 + $0x400] sm:$0xff]
      %v1245 = vld [vmem:[%s241 + $0x408] sm:$0xff]
      %v1246 = vld [vmem:[%s241 + $0x410] sm:$0xff]
      %v1247 = vld [vmem:[%s241 + $0x418] sm:$0xff]
      %1249 = vset.pattern.permute.xlu0 0
      %1250 = vperm.xlu0 %1249, %v985
      %v1251 = vpop.permute.xlu0 %1250
      %1254 = vset.pattern.permute.xlu0 0
      %1255 = vperm.xlu0 %1254, %v987
      %v1256 = vpop.permute.xlu0 %1255
      %1259 = vset.pattern.permute.xlu0 0
      %1260 = vperm.xlu0 %1259, %v989
      %v1261 = vpop.permute.xlu0 %1260
      %1264 = vset.pattern.permute.xlu0 0
      %1265 = vperm.xlu0 %1264, %v991
      %v1266 = vpop.permute.xlu0 %1265
      %1269 = vset.pattern.permute.xlu0 0
      %1270 = vperm.xlu0 %1269, %v993
      %v1271 = vpop.permute.xlu0 %1270
      %1274 = vset.pattern.permute.xlu0 0
      %1275 = vperm.xlu0 %1274, %v995
      %v1276 = vpop.permute.xlu0 %1275
      %1279 = vset.pattern.permute.xlu0 0
      %1280 = vperm.xlu0 %1279, %v997
      %v1281 = vpop.permute.xlu0 %1280
      %1284 = vset.pattern.permute.xlu0 0
      %1285 = vperm.xlu0 %1284, %v999
      %v1286 = vpop.permute.xlu0 %1285
      %1289 = vset.pattern.permute.xlu0 0
      %1290 = vperm.xlu0 %1289, %v1001
      %v1291 = vpop.permute.xlu0 %1290
      %1294 = vset.pattern.permute.xlu0 0
      %1295 = vperm.xlu0 %1294, %v1003
      %v1296 = vpop.permute.xlu0 %1295
      %1299 = vset.pattern.permute.xlu0 0
      %1300 = vperm.xlu0 %1299, %v1005
      %v1301 = vpop.permute.xlu0 %1300
      %1304 = vset.pattern.permute.xlu0 0
      %1305 = vperm.xlu0 %1304, %v1007
      %v1306 = vpop.permute.xlu0 %1305
      %1309 = vset.pattern.permute.xlu0 0
      %1310 = vperm.xlu0 %1309, %v1009
      %v1311 = vpop.permute.xlu0 %1310
      %1314 = vset.pattern.permute.xlu0 0
      %1315 = vperm.xlu0 %1314, %v1011
      %v1316 = vpop.permute.xlu0 %1315
      %1319 = vset.pattern.permute.xlu0 0
      %1320 = vperm.xlu0 %1319, %v1013
      %v1321 = vpop.permute.xlu0 %1320
      %1324 = vset.pattern.permute.xlu0 0
      %1325 = vperm.xlu0 %1324, %v1015
      %v1326 = vpop.permute.xlu0 %1325
      %1329 = vset.pattern.permute.xlu0 0
      %1330 = vperm.xlu0 %1329, %v1017
      %v1331 = vpop.permute.xlu0 %1330
      %1334 = vset.pattern.permute.xlu0 0
      %1335 = vperm.xlu0 %1334, %v1019
      %v1336 = vpop.permute.xlu0 %1335
      %1339 = vset.pattern.permute.xlu0 0
      %1340 = vperm.xlu0 %1339, %v1021
      %v1341 = vpop.permute.xlu0 %1340
      %1344 = vset.pattern.permute.xlu0 0
      %1345 = vperm.xlu0 %1344, %v1023
      %v1346 = vpop.permute.xlu0 %1345
      %1349 = vset.pattern.permute.xlu0 0
      %1350 = vperm.xlu0 %1349, %v1025
      %v1351 = vpop.permute.xlu0 %1350
      %1354 = vset.pattern.permute.xlu0 0
      %1355 = vperm.xlu0 %1354, %v1027
      %v1356 = vpop.permute.xlu0 %1355
      %1359 = vset.pattern.permute.xlu0 0
      %1360 = vperm.xlu0 %1359, %v1029
      %v1361 = vpop.permute.xlu0 %1360
      %1364 = vset.pattern.permute.xlu0 0
      %1365 = vperm.xlu0 %1364, %v1031
      %v1366 = vpop.permute.xlu0 %1365
      %1369 = vset.pattern.permute.xlu0 0
      %1370 = vperm.xlu0 %1369, %v1033
      %v1371 = vpop.permute.xlu0 %1370
      %1374 = vset.pattern.permute.xlu0 0
      %1375 = vperm.xlu0 %1374, %v1035
      %v1376 = vpop.permute.xlu0 %1375
      %1379 = vset.pattern.permute.xlu0 0
      %1380 = vperm.xlu0 %1379, %v1037
      %v1381 = vpop.permute.xlu0 %1380
      %1384 = vset.pattern.permute.xlu0 0
      %1385 = vperm.xlu0 %1384, %v1039
      %v1386 = vpop.permute.xlu0 %1385
      %1389 = vset.pattern.permute.xlu0 0
      %1390 = vperm.xlu0 %1389, %v1041
      %v1391 = vpop.permute.xlu0 %1390
      %1394 = vset.pattern.permute.xlu0 0
      %1395 = vperm.xlu0 %1394, %v1043
      %v1396 = vpop.permute.xlu0 %1395
      %1399 = vset.pattern.permute.xlu0 0
      %1400 = vperm.xlu0 %1399, %v1045
      %v1401 = vpop.permute.xlu0 %1400
      %1404 = vset.pattern.permute.xlu0 0
      %1405 = vperm.xlu0 %1404, %v1047
      %v1406 = vpop.permute.xlu0 %1405
      %1409 = vset.pattern.permute.xlu0 0
      %1410 = vperm.xlu0 %1409, %v1049
      %v1411 = vpop.permute.xlu0 %1410
      %1414 = vset.pattern.permute.xlu0 0
      %1415 = vperm.xlu0 %1414, %v1051
      %v1416 = vpop.permute.xlu0 %1415
      %1419 = vset.pattern.permute.xlu0 0
      %1420 = vperm.xlu0 %1419, %v1053
      %v1421 = vpop.permute.xlu0 %1420
      %1424 = vset.pattern.permute.xlu0 0
      %1425 = vperm.xlu0 %1424, %v1055
      %v1426 = vpop.permute.xlu0 %1425
      %1429 = vset.pattern.permute.xlu0 0
      %1430 = vperm.xlu0 %1429, %v1057
      %v1431 = vpop.permute.xlu0 %1430
      %1434 = vset.pattern.permute.xlu0 0
      %1435 = vperm.xlu0 %1434, %v1059
      %v1436 = vpop.permute.xlu0 %1435
      %1439 = vset.pattern.permute.xlu0 0
      %1440 = vperm.xlu0 %1439, %v1061
      %v1441 = vpop.permute.xlu0 %1440
      %1444 = vset.pattern.permute.xlu0 0
      %1445 = vperm.xlu0 %1444, %v1063
      %v1446 = vpop.permute.xlu0 %1445
      %1449 = vset.pattern.permute.xlu0 0
      %1450 = vperm.xlu0 %1449, %v1065
      %v1451 = vpop.permute.xlu0 %1450
      %1454 = vset.pattern.permute.xlu0 0
      %1455 = vperm.xlu0 %1454, %v1067
      %v1456 = vpop.permute.xlu0 %1455
      %1459 = vset.pattern.permute.xlu0 0
      %1460 = vperm.xlu0 %1459, %v1069
      %v1461 = vpop.permute.xlu0 %1460
      %1464 = vset.pattern.permute.xlu0 0
      %1465 = vperm.xlu0 %1464, %v1071
      %v1466 = vpop.permute.xlu0 %1465
      %1469 = vset.pattern.permute.xlu0 0
      %1470 = vperm.xlu0 %1469, %v1073
      %v1471 = vpop.permute.xlu0 %1470
      %1474 = vset.pattern.permute.xlu0 0
      %1475 = vperm.xlu0 %1474, %v1075
      %v1476 = vpop.permute.xlu0 %1475
      %1479 = vset.pattern.permute.xlu0 0
      %1480 = vperm.xlu0 %1479, %v1077
      %v1481 = vpop.permute.xlu0 %1480
      %1484 = vset.pattern.permute.xlu0 0
      %1485 = vperm.xlu0 %1484, %v1079
      %v1486 = vpop.permute.xlu0 %1485
      %1489 = vset.pattern.permute.xlu0 0
      %1490 = vperm.xlu0 %1489, %v1081
      %v1491 = vpop.permute.xlu0 %1490
      %1494 = vset.pattern.permute.xlu0 0
      %1495 = vperm.xlu0 %1494, %v1083
      %v1496 = vpop.permute.xlu0 %1495
      %1499 = vset.pattern.permute.xlu0 0
      %1500 = vperm.xlu0 %1499, %v1085
      %v1501 = vpop.permute.xlu0 %1500
      %1504 = vset.pattern.permute.xlu0 0
      %1505 = vperm.xlu0 %1504, %v1087
      %v1506 = vpop.permute.xlu0 %1505
      %1509 = vset.pattern.permute.xlu0 0
      %1510 = vperm.xlu0 %1509, %v1089
      %v1511 = vpop.permute.xlu0 %1510
      %1514 = vset.pattern.permute.xlu0 0
      %1515 = vperm.xlu0 %1514, %v1091
      %v1516 = vpop.permute.xlu0 %1515
      %1519 = vset.pattern.permute.xlu0 0
      %1520 = vperm.xlu0 %1519, %v1093
      %v1521 = vpop.permute.xlu0 %1520
      %1524 = vset.pattern.permute.xlu0 0
      %1525 = vperm.xlu0 %1524, %v1095
      %v1526 = vpop.permute.xlu0 %1525
      %1529 = vset.pattern.permute.xlu0 0
      %1530 = vperm.xlu0 %1529, %v1097
      %v1531 = vpop.permute.xlu0 %1530
      %1534 = vset.pattern.permute.xlu0 0
      %1535 = vperm.xlu0 %1534, %v1099
      %v1536 = vpop.permute.xlu0 %1535
      %1539 = vset.pattern.permute.xlu0 0
      %1540 = vperm.xlu0 %1539, %v1101
      %v1541 = vpop.permute.xlu0 %1540
      %1544 = vset.pattern.permute.xlu0 0
      %1545 = vperm.xlu0 %1544, %v1103
      %v1546 = vpop.permute.xlu0 %1545
      %1549 = vset.pattern.permute.xlu0 0
      %1550 = vperm.xlu0 %1549, %v1105
      %v1551 = vpop.permute.xlu0 %1550
      %1554 = vset.pattern.permute.xlu0 0
      %1555 = vperm.xlu0 %1554, %v1107
      %v1556 = vpop.permute.xlu0 %1555
      %1559 = vset.pattern.permute.xlu0 0
      %1560 = vperm.xlu0 %1559, %v1109
      %v1561 = vpop.permute.xlu0 %1560
      %1564 = vset.pattern.permute.xlu0 0
      %1565 = vperm.xlu0 %1564, %v1111
      %v1566 = vpop.permute.xlu0 %1565
      %1569 = vset.pattern.permute.xlu0 0
      %1570 = vperm.xlu0 %1569, %v1113
      %v1571 = vpop.permute.xlu0 %1570
      %1574 = vset.pattern.permute.xlu0 0
      %1575 = vperm.xlu0 %1574, %v1115
      %v1576 = vpop.permute.xlu0 %1575
      %v1578 = vmul.f32 %v1116, %v1251
      %v1579 = vmul.f32 %v1117, %v1251
      %v1580 = vmul.f32 %v1118, %v1256
      %v1581 = vmul.f32 %v1119, %v1256
      %v1582 = vmul.f32 %v1120, %v1261
      %v1583 = vmul.f32 %v1121, %v1261
      %v1584 = vmul.f32 %v1122, %v1266
      %v1585 = vmul.f32 %v1123, %v1266
      %v1586 = vmul.f32 %v1124, %v1271
      %v1587 = vmul.f32 %v1125, %v1271
      %v1588 = vmul.f32 %v1126, %v1276
      %v1589 = vmul.f32 %v1127, %v1276
      %v1590 = vmul.f32 %v1128, %v1281
      %v1591 = vmul.f32 %v1129, %v1281
      %v1592 = vmul.f32 %v1130, %v1286
      %v1593 = vmul.f32 %v1131, %v1286
      %v1594 = vmul.f32 %v1132, %v1291
      %v1595 = vmul.f32 %v1133, %v1291
      %v1596 = vmul.f32 %v1134, %v1296
      %v1597 = vmul.f32 %v1135, %v1296
      %v1598 = vmul.f32 %v1136, %v1301
      %v1599 = vmul.f32 %v1137, %v1301
      %v1600 = vmul.f32 %v1138, %v1306
      %v1601 = vmul.f32 %v1139, %v1306
      %v1602 = vmul.f32 %v1140, %v1311
      %v1603 = vmul.f32 %v1141, %v1311
      %v1604 = vmul.f32 %v1142, %v1316
      %v1605 = vmul.f32 %v1143, %v1316
      %v1606 = vmul.f32 %v1144, %v1321
      %v1607 = vmul.f32 %v1145, %v1321
      %v1608 = vmul.f32 %v1146, %v1326
      %v1609 = vmul.f32 %v1147, %v1326
      %v1610 = vmul.f32 %v1148, %v1331
      %v1611 = vmul.f32 %v1149, %v1331
      %v1612 = vmul.f32 %v1150, %v1336
      %v1613 = vmul.f32 %v1151, %v1336
      %v1614 = vmul.f32 %v1152, %v1341
      %v1615 = vmul.f32 %v1153, %v1341
      %v1616 = vmul.f32 %v1154, %v1346
      %v1617 = vmul.f32 %v1155, %v1346
      %v1618 = vmul.f32 %v1156, %v1351
      %v1619 = vmul.f32 %v1157, %v1351
      %v1620 = vmul.f32 %v1158, %v1356
      %v1621 = vmul.f32 %v1159, %v1356
      %v1622 = vmul.f32 %v1160, %v1361
      %v1623 = vmul.f32 %v1161, %v1361
      %v1624 = vmul.f32 %v1162, %v1366
      %v1625 = vmul.f32 %v1163, %v1366
      %v1626 = vmul.f32 %v1164, %v1371
      %v1627 = vmul.f32 %v1165, %v1371
      %v1628 = vmul.f32 %v1166, %v1376
      %v1629 = vmul.f32 %v1167, %v1376
      %v1630 = vmul.f32 %v1168, %v1381
      %v1631 = vmul.f32 %v1169, %v1381
      %v1632 = vmul.f32 %v1170, %v1386
      %v1633 = vmul.f32 %v1171, %v1386
      %v1634 = vmul.f32 %v1172, %v1391
      %v1635 = vmul.f32 %v1173, %v1391
      %v1636 = vmul.f32 %v1174, %v1396
      %v1637 = vmul.f32 %v1175, %v1396
      %v1638 = vmul.f32 %v1176, %v1401
      %v1639 = vmul.f32 %v1177, %v1401
      %v1640 = vmul.f32 %v1178, %v1406
      %v1641 = vmul.f32 %v1179, %v1406
      %v1642 = vmul.f32 %v1180, %v1411
      %v1643 = vmul.f32 %v1181, %v1411
      %v1644 = vmul.f32 %v1182, %v1416
      %v1645 = vmul.f32 %v1183, %v1416
      %v1646 = vmul.f32 %v1184, %v1421
      %v1647 = vmul.f32 %v1185, %v1421
      %v1648 = vmul.f32 %v1186, %v1426
      %v1649 = vmul.f32 %v1187, %v1426
      %v1650 = vmul.f32 %v1188, %v1431
      %v1651 = vmul.f32 %v1189, %v1431
      %v1652 = vmul.f32 %v1190, %v1436
      %v1653 = vmul.f32 %v1191, %v1436
      %v1654 = vmul.f32 %v1192, %v1441
      %v1655 = vmul.f32 %v1193, %v1441
      %v1656 = vmul.f32 %v1194, %v1446
      %v1657 = vmul.f32 %v1195, %v1446
      %v1658 = vmul.f32 %v1196, %v1451
      %v1659 = vmul.f32 %v1197, %v1451
      %v1660 = vmul.f32 %v1198, %v1456
      %v1661 = vmul.f32 %v1199, %v1456
      %v1662 = vmul.f32 %v1200, %v1461
      %v1663 = vmul.f32 %v1201, %v1461
      %v1664 = vmul.f32 %v1202, %v1466
      %v1665 = vmul.f32 %v1203, %v1466
      %v1666 = vmul.f32 %v1204, %v1471
      %v1667 = vmul.f32 %v1205, %v1471
      %v1668 = vmul.f32 %v1206, %v1476
      %v1669 = vmul.f32 %v1207, %v1476
      %v1670 = vmul.f32 %v1208, %v1481
      %v1671 = vmul.f32 %v1209, %v1481
      %v1672 = vmul.f32 %v1210, %v1486
      %v1673 = vmul.f32 %v1211, %v1486
      %v1674 = vmul.f32 %v1212, %v1491
      %v1675 = vmul.f32 %v1213, %v1491
      %v1676 = vmul.f32 %v1214, %v1496
      %v1677 = vmul.f32 %v1215, %v1496
      %v1678 = vmul.f32 %v1216, %v1501
      %v1679 = vmul.f32 %v1217, %v1501
      %v1680 = vmul.f32 %v1218, %v1506
      %v1681 = vmul.f32 %v1219, %v1506
      %v1682 = vmul.f32 %v1220, %v1511
      %v1683 = vmul.f32 %v1221, %v1511
      %v1684 = vmul.f32 %v1222, %v1516
      %v1685 = vmul.f32 %v1223, %v1516
      %v1686 = vmul.f32 %v1224, %v1521
      %v1687 = vmul.f32 %v1225, %v1521
      %v1688 = vmul.f32 %v1226, %v1526
      %v1689 = vmul.f32 %v1227, %v1526
      %v1690 = vmul.f32 %v1228, %v1531
      %v1691 = vmul.f32 %v1229, %v1531
      %v1692 = vmul.f32 %v1230, %v1536
      %v1693 = vmul.f32 %v1231, %v1536
      %v1694 = vmul.f32 %v1232, %v1541
      %v1695 = vmul.f32 %v1233, %v1541
      %v1696 = vmul.f32 %v1234, %v1546
      %v1697 = vmul.f32 %v1235, %v1546
      %v1698 = vmul.f32 %v1236, %v1551
      %v1699 = vmul.f32 %v1237, %v1551
      %v1700 = vmul.f32 %v1238, %v1556
      %v1701 = vmul.f32 %v1239, %v1556
      %v1702 = vmul.f32 %v1240, %v1561
      %v1703 = vmul.f32 %v1241, %v1561
      %v1704 = vmul.f32 %v1242, %v1566
      %v1705 = vmul.f32 %v1243, %v1566
      %v1706 = vmul.f32 %v1244, %v1571
      %v1707 = vmul.f32 %v1245, %v1571
      %v1708 = vmul.f32 %v1246, %v1576
      %v1709 = vmul.f32 %v1247, %v1576
      %1710 = vst [vmem:[%s248] sm:$0xff] %v1578
      %vm1711 = vcmask 556032
      %1712 = vst.msk [vmem:[%s248 + $0x8] sm:$0xff] %vm1711, %v1579
      %1713 = vst [vmem:[%s248 + $0x10] sm:$0xff] %v1580
      %1714 = vst.msk [vmem:[%s248 + $0x18] sm:$0xff] %vm1711, %v1581
      %1715 = vst [vmem:[%s248 + $0x20] sm:$0xff] %v1582
      %1716 = vst.msk [vmem:[%s248 + $0x28] sm:$0xff] %vm1711, %v1583
      %1717 = vst [vmem:[%s248 + $0x30] sm:$0xff] %v1584
      %1718 = vst.msk [vmem:[%s248 + $0x38] sm:$0xff] %vm1711, %v1585
      %1719 = vst [vmem:[%s248 + $0x40] sm:$0xff] %v1586
      %1720 = vst.msk [vmem:[%s248 + $0x48] sm:$0xff] %vm1711, %v1587
      %1721 = vst [vmem:[%s248 + $0x50] sm:$0xff] %v1588
      %1722 = vst.msk [vmem:[%s248 + $0x58] sm:$0xff] %vm1711, %v1589
      %1723 = vst [vmem:[%s248 + $0x60] sm:$0xff] %v1590
      %1724 = vst.msk [vmem:[%s248 + $0x68] sm:$0xff] %vm1711, %v1591
      %1725 = vst [vmem:[%s248 + $0x70] sm:$0xff] %v1592
      %1726 = vst.msk [vmem:[%s248 + $0x78] sm:$0xff] %vm1711, %v1593
      %1727 = vst [vmem:[%s248 + $0x80] sm:$0xff] %v1594
      %1728 = vst.msk [vmem:[%s248 + $0x88] sm:$0xff] %vm1711, %v1595
      %1729 = vst [vmem:[%s248 + $0x90] sm:$0xff] %v1596
      %1730 = vst.msk [vmem:[%s248 + $0x98] sm:$0xff] %vm1711, %v1597
      %1731 = vst [vmem:[%s248 + $0xa0] sm:$0xff] %v1598
      %1732 = vst.msk [vmem:[%s248 + $0xa8] sm:$0xff] %vm1711, %v1599
      %1733 = vst [vmem:[%s248 + $0xb0] sm:$0xff] %v1600
      %1734 = vst.msk [vmem:[%s248 + $0xb8] sm:$0xff] %vm1711, %v1601
      %1735 = vst [vmem:[%s248 + $0xc0] sm:$0xff] %v1602
      %1736 = vst.msk [vmem:[%s248 + $0xc8] sm:$0xff] %vm1711, %v1603
      %1737 = vst [vmem:[%s248 + $0xd0] sm:$0xff] %v1604
      %1738 = vst.msk [vmem:[%s248 + $0xd8] sm:$0xff] %vm1711, %v1605
      %1739 = vst [vmem:[%s248 + $0xe0] sm:$0xff] %v1606
      %1740 = vst.msk [vmem:[%s248 + $0xe8] sm:$0xff] %vm1711, %v1607
      %1741 = vst [vmem:[%s248 + $0xf0] sm:$0xff] %v1608
      %1742 = vst.msk [vmem:[%s248 + $0xf8] sm:$0xff] %vm1711, %v1609
      %1743 = vst [vmem:[%s248 + $0x100] sm:$0xff] %v1610
      %1744 = vst.msk [vmem:[%s248 + $0x108] sm:$0xff] %vm1711, %v1611
      %1745 = vst [vmem:[%s248 + $0x110] sm:$0xff] %v1612
      %1746 = vst.msk [vmem:[%s248 + $0x118] sm:$0xff] %vm1711, %v1613
      %1747 = vst [vmem:[%s248 + $0x120] sm:$0xff] %v1614
      %1748 = vst.msk [vmem:[%s248 + $0x128] sm:$0xff] %vm1711, %v1615
      %1749 = vst [vmem:[%s248 + $0x130] sm:$0xff] %v1616
      %1750 = vst.msk [vmem:[%s248 + $0x138] sm:$0xff] %vm1711, %v1617
      %1751 = vst [vmem:[%s248 + $0x140] sm:$0xff] %v1618
      %1752 = vst.msk [vmem:[%s248 + $0x148] sm:$0xff] %vm1711, %v1619
      %1753 = vst [vmem:[%s248 + $0x150] sm:$0xff] %v1620
      %1754 = vst.msk [vmem:[%s248 + $0x158] sm:$0xff] %vm1711, %v1621
      %1755 = vst [vmem:[%s248 + $0x160] sm:$0xff] %v1622
      %1756 = vst.msk [vmem:[%s248 + $0x168] sm:$0xff] %vm1711, %v1623
      %1757 = vst [vmem:[%s248 + $0x170] sm:$0xff] %v1624
      %1758 = vst.msk [vmem:[%s248 + $0x178] sm:$0xff] %vm1711, %v1625
      %1759 = vst [vmem:[%s248 + $0x180] sm:$0xff] %v1626
      %1760 = vst.msk [vmem:[%s248 + $0x188] sm:$0xff] %vm1711, %v1627
      %1761 = vst [vmem:[%s248 + $0x190] sm:$0xff] %v1628
      %1762 = vst.msk [vmem:[%s248 + $0x198] sm:$0xff] %vm1711, %v1629
      %1763 = vst [vmem:[%s248 + $0x1a0] sm:$0xff] %v1630
      %1764 = vst.msk [vmem:[%s248 + $0x1a8] sm:$0xff] %vm1711, %v1631
      %1765 = vst [vmem:[%s248 + $0x1b0] sm:$0xff] %v1632
      %1766 = vst.msk [vmem:[%s248 + $0x1b8] sm:$0xff] %vm1711, %v1633
      %1767 = vst [vmem:[%s248 + $0x1c0] sm:$0xff] %v1634
      %1768 = vst.msk [vmem:[%s248 + $0x1c8] sm:$0xff] %vm1711, %v1635
      %1769 = vst [vmem:[%s248 + $0x1d0] sm:$0xff] %v1636
      %1770 = vst.msk [vmem:[%s248 + $0x1d8] sm:$0xff] %vm1711, %v1637
      %1771 = vst [vmem:[%s248 + $0x1e0] sm:$0xff] %v1638
      %1772 = vst.msk [vmem:[%s248 + $0x1e8] sm:$0xff] %vm1711, %v1639
      %1773 = vst [vmem:[%s248 + $0x1f0] sm:$0xff] %v1640
      %1774 = vst.msk [vmem:[%s248 + $0x1f8] sm:$0xff] %vm1711, %v1641
      %1775 = vst [vmem:[%s248 + $0x200] sm:$0xff] %v1642
      %1776 = vst.msk [vmem:[%s248 + $0x208] sm:$0xff] %vm1711, %v1643
      %1777 = vst [vmem:[%s248 + $0x210] sm:$0xff] %v1644
      %1778 = vst.msk [vmem:[%s248 + $0x218] sm:$0xff] %vm1711, %v1645
      %1779 = vst [vmem:[%s248 + $0x220] sm:$0xff] %v1646
      %1780 = vst.msk [vmem:[%s248 + $0x228] sm:$0xff] %vm1711, %v1647
      %1781 = vst [vmem:[%s248 + $0x230] sm:$0xff] %v1648
      %1782 = vst.msk [vmem:[%s248 + $0x238] sm:$0xff] %vm1711, %v1649
      %1783 = vst [vmem:[%s248 + $0x240] sm:$0xff] %v1650
      %1784 = vst.msk [vmem:[%s248 + $0x248] sm:$0xff] %vm1711, %v1651
      %1785 = vst [vmem:[%s248 + $0x250] sm:$0xff] %v1652
      %1786 = vst.msk [vmem:[%s248 + $0x258] sm:$0xff] %vm1711, %v1653
      %1787 = vst [vmem:[%s248 + $0x260] sm:$0xff] %v1654
      %1788 = vst.msk [vmem:[%s248 + $0x268] sm:$0xff] %vm1711, %v1655
      %1789 = vst [vmem:[%s248 + $0x270] sm:$0xff] %v1656
      %1790 = vst.msk [vmem:[%s248 + $0x278] sm:$0xff] %vm1711, %v1657
      %1791 = vst [vmem:[%s248 + $0x280] sm:$0xff] %v1658
      %1792 = vst.msk [vmem:[%s248 + $0x288] sm:$0xff] %vm1711, %v1659
      %1793 = vst [vmem:[%s248 + $0x290] sm:$0xff] %v1660
      %1794 = vst.msk [vmem:[%s248 + $0x298] sm:$0xff] %vm1711, %v1661
      %1795 = vst [vmem:[%s248 + $0x2a0] sm:$0xff] %v1662
      %1796 = vst.msk [vmem:[%s248 + $0x2a8] sm:$0xff] %vm1711, %v1663
      %1797 = vst [vmem:[%s248 + $0x2b0] sm:$0xff] %v1664
      %1798 = vst.msk [vmem:[%s248 + $0x2b8] sm:$0xff] %vm1711, %v1665
      %1799 = vst [vmem:[%s248 + $0x2c0] sm:$0xff] %v1666
      %1800 = vst.msk [vmem:[%s248 + $0x2c8] sm:$0xff] %vm1711, %v1667
      %1801 = vst [vmem:[%s248 + $0x2d0] sm:$0xff] %v1668
      %1802 = vst.msk [vmem:[%s248 + $0x2d8] sm:$0xff] %vm1711, %v1669
      %1803 = vst [vmem:[%s248 + $0x2e0] sm:$0xff] %v1670
      %1804 = vst.msk [vmem:[%s248 + $0x2e8] sm:$0xff] %vm1711, %v1671
      %1805 = vst [vmem:[%s248 + $0x2f0] sm:$0xff] %v1672
      %1806 = vst.msk [vmem:[%s248 + $0x2f8] sm:$0xff] %vm1711, %v1673
      %1807 = vst [vmem:[%s248 + $0x300] sm:$0xff] %v1674
      %1808 = vst.msk [vmem:[%s248 + $0x308] sm:$0xff] %vm1711, %v1675
      %1809 = vst [vmem:[%s248 + $0x310] sm:$0xff] %v1676
      %1810 = vst.msk [vmem:[%s248 + $0x318] sm:$0xff] %vm1711, %v1677
      %1811 = vst [vmem:[%s248 + $0x320] sm:$0xff] %v1678
      %1812 = vst.msk [vmem:[%s248 + $0x328] sm:$0xff] %vm1711, %v1679
      %1813 = vst [vmem:[%s248 + $0x330] sm:$0xff] %v1680
      %1814 = vst.msk [vmem:[%s248 + $0x338] sm:$0xff] %vm1711, %v1681
      %1815 = vst [vmem:[%s248 + $0x340] sm:$0xff] %v1682
      %1816 = vst.msk [vmem:[%s248 + $0x348] sm:$0xff] %vm1711, %v1683
      %1817 = vst [vmem:[%s248 + $0x350] sm:$0xff] %v1684
      %1818 = vst.msk [vmem:[%s248 + $0x358] sm:$0xff] %vm1711, %v1685
      %1819 = vst [vmem:[%s248 + $0x360] sm:$0xff] %v1686
      %1820 = vst.msk [vmem:[%s248 + $0x368] sm:$0xff] %vm1711, %v1687
      %1821 = vst [vmem:[%s248 + $0x370] sm:$0xff] %v1688
      %1822 = vst.msk [vmem:[%s248 + $0x378] sm:$0xff] %vm1711, %v1689
      %1823 = vst [vmem:[%s248 + $0x380] sm:$0xff] %v1690
      %1824 = vst.msk [vmem:[%s248 + $0x388] sm:$0xff] %vm1711, %v1691
      %1825 = vst [vmem:[%s248 + $0x390] sm:$0xff] %v1692
      %1826 = vst.msk [vmem:[%s248 + $0x398] sm:$0xff] %vm1711, %v1693
      %1827 = vst [vmem:[%s248 + $0x3a0] sm:$0xff] %v1694
      %1828 = vst.msk [vmem:[%s248 + $0x3a8] sm:$0xff] %vm1711, %v1695
      %1829 = vst [vmem:[%s248 + $0x3b0] sm:$0xff] %v1696
      %1830 = vst.msk [vmem:[%s248 + $0x3b8] sm:$0xff] %vm1711, %v1697
      %1831 = vst [vmem:[%s248 + $0x3c0] sm:$0xff] %v1698
      %1832 = vst.msk [vmem:[%s248 + $0x3c8] sm:$0xff] %vm1711, %v1699
      %1833 = vst [vmem:[%s248 + $0x3d0] sm:$0xff] %v1700
      %1834 = vst.msk [vmem:[%s248 + $0x3d8] sm:$0xff] %vm1711, %v1701
      %1835 = vst [vmem:[%s248 + $0x3e0] sm:$0xff] %v1702
      %1836 = vst.msk [vmem:[%s248 + $0x3e8] sm:$0xff] %vm1711, %v1703
      %1837 = vst [vmem:[%s248 + $0x3f0] sm:$0xff] %v1704
      %1838 = vst.msk [vmem:[%s248 + $0x3f8] sm:$0xff] %vm1711, %v1705
      %1839 = vst [vmem:[%s248 + $0x400] sm:$0xff] %v1706
      %1840 = vst.msk [vmem:[%s248 + $0x408] sm:$0xff] %vm1711, %v1707
      %1841 = vst [vmem:[%s248 + $0x410] sm:$0xff] %v1708
      %1842 = vst.msk [vmem:[%s248 + $0x418] sm:$0xff] %vm1711, %v1709
      %s1843 = smul.u32 66, %s15
      %p1844 = scmp.lt.s32.totalorder %s1843, 131
      %s1845 = scalar_select %p1844, %s1843, 131
      %s1846 = smul.addr %s1845, 2
      %s1847 = smul.addr %s1846, 8
      %s1848 = scalar_lea.vmem %s4, %s1847
      // Predicated region
      $region37: #{tpu_custom_call.1} parent=35 // pred_check
        %p1849 = pneg %p132
      $region38: #{tpu_custom_call.1} parent=35 // pred_check_branch
        %1851 = sbr.rel (%p1849) target = $region40
      $region39: #{tpu_custom_call.1} parent=35 // pred_region
        %s1852 = smul.u32 66, %s15
      $region40: #{tpu_custom_call.1} parent=35 // pred_fallthru
        _
    $region36: #{tpu_custom_call.1} parent=5 // pred_fallthru
      _
    %p1853 = scmp.le.s32.totalorder 2, %s10
    // Predicated region
    $region41: #{tpu_custom_call.1} parent=5 // pred_check
      %p1854 = pneg %p1853
    $region42: #{tpu_custom_call.1} parent=5 // pred_check_branch
      %1856 = sbr.rel (%p1854) target = $region44
    $region43: #{tpu_custom_call.1} parent=5 // pred_region
      %s1857 = ssub.s32 %s10, 2
      // Predicated region
      $region45: #{tpu_custom_call.1} parent=43 // pred_check
        %p1858 = pneg %p138
      $region46: #{tpu_custom_call.1} parent=43 // pred_check_branch
        %1860 = sbr.rel (%p1858) target = $region48
      $region47: #{tpu_custom_call.1} parent=43 // pred_region
        %s1861 = smul.u32 66, %s16
        %p1862 = scmp.lt.s32.totalorder %s1861, 131
        %s1863 = scalar_select %p1862, %s1861, 131
        %s1864 = smul.addr %s1863, 2
        %s1865 = smul.addr %s1864, 8
        %s1866 = scalar_lea.vmem %s4, %s1865
      $region48: #{tpu_custom_call.1} parent=43 // pred_fallthru
        _
    $region44: #{tpu_custom_call.1} parent=5 // pred_fallthru
      _
  $region6: #{tpu_custom_call.1} parent=0 // loop_footer
    %s14 = sadd.s32 1, %s10
  $region7: #{tpu_custom_call.1} parent=0 // loop_footer_branch
    %9 = sbr.rel target = $region3
  $region8: #{tpu_custom_call.1} parent=0 // loop_exit
    _

</llo_original>
